<compile_context>
chip_gen: v7x
topology: tpu7x:2x2x1
jax: 0.10.0
libtpu: 0.0.40
codegen_flags: <defaults>
</compile_context>

<pallas_src>
import math

import jax
import jax.numpy as jnp
from jax.experimental import pallas as pl
from jax.experimental.pallas import tpu as pltpu

SCALE = math.sqrt(0.5)


def _encoder_kernel(emb_ref, mask_ref, we2h_ref, be2h_ref, wconv_ref,
                    bconv_ref, wh2e_ref, bh2e_ref, conved_ref, combined_ref):
    """One row-block (batch_block sequences): emb2hid -> conv/GLU stack -> hid2emb."""
    emb = emb_ref[...]                       # (M, E) f32
    m = emb.shape[0]
    hid = we2h_ref.shape[1]
    n_layers = wconv_ref.shape[0]
    ksize = mask_ref.shape[0]
    pad = (ksize - 1) // 2
    cdt = we2h_ref.dtype                     # MXU operand dtype (bf16 or f32)

    # emb2hid linear (bf16 operands, f32 accumulation).
    x = jnp.dot(emb.astype(cdt), we2h_ref[...],
                preferred_element_type=jnp.float32) + be2h_ref[...]   # (M, H) f32

    # Layer-independent sequence-boundary masks, hoisted out of the layer loop.
    tap_masks = [None if t == pad else mask_ref[t] for t in range(ksize)]  # (M, 1) f32

    for layer in range(n_layers):
        # im2col: k shifted copies of x stacked along lanes -> (M, k*H).
        parts = []
        for t in range(ksize):
            shift = t - pad
            if shift == 0:
                parts.append(x)
            else:
                rolled = pltpu.roll(x, (-shift) % m, axis=0)   # XLU sublane rotate
                parts.append(rolled * tap_masks[t])            # zero across seq edges
        x_stack = jnp.concatenate(parts, axis=-1)              # (M, k*H) f32

        # One fused matmul per layer: K=k*H, N=2*H (GLU content | gate).
        out = jnp.dot(x_stack.astype(cdt), wconv_ref[layer],
                      preferred_element_type=jnp.float32) + bconv_ref[layer]  # (M, 2H)
        a = out[:, :hid]
        g = out[:, hid:]
        x = (a * jax.nn.sigmoid(g) + x) * SCALE                # GLU + residual + scale

    # hid2emb linear.
    conved = jnp.dot(x.astype(cdt), wh2e_ref[...],
                     preferred_element_type=jnp.float32) + bh2e_ref[...]      # (M, E)
    conved_ref[...] = conved.astype(conved_ref.dtype)
    combined_ref[...] = ((conved + emb) * SCALE).astype(combined_ref.dtype)


def encoder_forward(src, params, *, n_layers, kernel_size,
                    compute_dtype=jnp.bfloat16, batch_block=None):
    """ConvS2S Encoder forward. src: (B, L) int32 tokens. Returns (conved, combined)."""
    batch, seq_len = src.shape
    emb_dim = params["tok_embedding"].shape[1]
    hid_dim = params["we2h"].shape[1]
    pad = (kernel_size - 1) // 2

    # ---- glue (plain JAX): embedding lookups, batch folding, masks, weight fusion ----
    tok_embedded = params["tok_embedding"][src]                          # (B, L, E)
    pos_embedded = params["pos_embedding"][jnp.arange(seq_len)][None]    # (1, L, E)
    embedded = (tok_embedded + pos_embedded).astype(jnp.float32)         # (B, L, E)
    emb2d = embedded.reshape(batch * seq_len, emb_dim)                   # fold B into M

    # Per-tap validity mask (position-within-sequence), shape (k, B*L, 1) f32.
    pos = jnp.arange(batch * seq_len, dtype=jnp.int32) % seq_len
    tap_mask = jnp.stack([
        ((pos + (t - pad) >= 0) & (pos + (t - pad) < seq_len)).astype(jnp.float32)
        for t in range(kernel_size)
    ])[..., None]                                                        # (k, B*L, 1)

    # Fused conv weight: GLU halves concatenated along N, taps stacked along K.
    w_ab = jnp.concatenate([params["conv_wa"], params["conv_wb"]], axis=-1)
    w_conv = w_ab.reshape(n_layers, kernel_size * hid_dim,
                          2 * hid_dim).astype(compute_dtype)             # (nl, kH, 2H)
    b_conv = jnp.concatenate([params["conv_ba"], params["conv_bb"]],
                             axis=-1)[:, None, :].astype(jnp.float32)    # (nl, 1, 2H)

    we2h = params["we2h"].astype(compute_dtype)
    wh2e = params["wh2e"].astype(compute_dtype)
    be2h = params["be2h"].astype(jnp.float32)
    bh2e = params["bh2e"].astype(jnp.float32)

    # Fold as much batch into M as possible while keeping >=2 parallel grid steps.
    if batch_block is None:
        batch_block = batch // 2 if (batch % 2 == 0 and batch >= 2) else 1
    assert batch % batch_block == 0
    num_blocks = batch // batch_block
    m_blk = batch_block * seq_len
    assert m_blk % 8 == 0 or num_blocks == 1, "row block must be sublane aligned"

    grid_spec = pltpu.PrefetchScalarGridSpec(
        num_scalar_prefetch=0,
        grid=(num_blocks,),
        in_specs=[
            pl.BlockSpec((m_blk, emb_dim), lambda i: (i, 0)),
            pl.BlockSpec((kernel_size, m_blk, 1), lambda i: (0, i, 0)),
            pl.BlockSpec((emb_dim, hid_dim), lambda i: (0, 0)),
            pl.BlockSpec((1, hid_dim), lambda i: (0, 0)),
            pl.BlockSpec((n_layers, kernel_size * hid_dim, 2 * hid_dim),
                         lambda i: (0, 0, 0)),
            pl.BlockSpec((n_layers, 1, 2 * hid_dim), lambda i: (0, 0, 0)),
            pl.BlockSpec((hid_dim, emb_dim), lambda i: (0, 0)),
            pl.BlockSpec((1, emb_dim), lambda i: (0, 0)),
        ],
        out_specs=[
            pl.BlockSpec((m_blk, emb_dim), lambda i: (i, 0)),
            pl.BlockSpec((m_blk, emb_dim), lambda i: (i, 0)),
        ],
    )

    # Advisory cost estimate so XLA schedules the embedding HLO around the call.
    m_total = batch * seq_len
    w_itemsize = jnp.dtype(compute_dtype).itemsize
    flops = 2 * m_total * (emb_dim * hid_dim
                           + n_layers * kernel_size * hid_dim * 2 * hid_dim
                           + hid_dim * emb_dim)
    bytes_accessed = (
        m_total * emb_dim * 4 + kernel_size * m_total * 4
        + (emb_dim * hid_dim + hid_dim * emb_dim
           + n_layers * kernel_size * hid_dim * 2 * hid_dim) * w_itemsize
        + (hid_dim + emb_dim + n_layers * 2 * hid_dim) * 4
        + 2 * m_total * emb_dim * 4)
    cost = pl.CostEstimate(flops=flops,
                           transcendentals=m_total * hid_dim * n_layers,
                           bytes_accessed=bytes_accessed)

    conved2d, combined2d = pl.pallas_call(
        _encoder_kernel,
        out_shape=(
            jax.ShapeDtypeStruct((m_total, emb_dim), jnp.float32),
            jax.ShapeDtypeStruct((m_total, emb_dim), jnp.float32),
        ),
        grid_spec=grid_spec,
        compiler_params=pltpu.CompilerParams(
            dimension_semantics=("parallel",)),
        cost_estimate=cost,
    )(emb2d, tap_mask, we2h, be2h, w_conv, b_conv, wh2e, bh2e)

    conved = conved2d.reshape(batch, seq_len, emb_dim)
    combined = combined2d.reshape(batch, seq_len, emb_dim)
    return conved, combined


def reference_forward(src, params, *, n_layers, kernel_size):
    """Pure-JAX f32 reference mirroring the PyTorch module (dropout = identity)."""
    seq_len = src.shape[1]
    tok = params["tok_embedding"][src]
    pos = params["pos_embedding"][jnp.arange(seq_len)][None]
    embedded = tok + pos                                                 # (B, L, E)
    x = embedded @ params["we2h"] + params["be2h"][0]                    # (B, L, H)
    pad = (kernel_size - 1) // 2
    for layer in range(n_layers):
        xp = jnp.pad(x, ((0, 0), (pad, pad), (0, 0)))
        a = jnp.zeros_like(x) + params["conv_ba"][layer]
        b = jnp.zeros_like(x) + params["conv_bb"][layer]
        for tap in range(kernel_size):
            xs = xp[:, tap:tap + seq_len, :]
            a = a + xs @ params["conv_wa"][layer, tap]
            b = b + xs @ params["conv_wb"][layer, tap]
        x = (a * jax.nn.sigmoid(b) + x) * SCALE
    conved = x @ params["wh2e"] + params["bh2e"][0]
    combined = (conved + embedded) * SCALE
    return conved, combined


def init_params(key, *, input_dim, emb_dim, hid_dim, n_layers, kernel_size,
                max_length):
    ks = jax.random.split(key, 9)
    s = 0.1
    return {
        "tok_embedding": s * jax.random.normal(ks[0], (input_dim, emb_dim), jnp.float32),
        "pos_embedding": s * jax.random.normal(ks[1], (max_length, emb_dim), jnp.float32),
        # Linear weights stored (in, out) so y = x @ W + b.
        "we2h": s * jax.random.normal(ks[2], (emb_dim, hid_dim), jnp.float32),
        "be2h": s * jax.random.normal(ks[3], (1, hid_dim), jnp.float32),
        "wh2e": s * jax.random.normal(ks[4], (hid_dim, emb_dim), jnp.float32),
        "bh2e": s * jax.random.normal(ks[5], (1, emb_dim), jnp.float32),
        # Conv1d weight (2*hid, hid, k) rearranged to per-tap (k, hid_in, hid_out)
        # and pre-split into GLU halves a (content) / b (gate).
        "conv_wa": s * jax.random.normal(ks[6], (n_layers, kernel_size, hid_dim, hid_dim), jnp.float32),
        "conv_wb": s * jax.random.normal(ks[7], (n_layers, kernel_size, hid_dim, hid_dim), jnp.float32),
        "conv_ba": s * jax.random.normal(ks[8], (n_layers, hid_dim), jnp.float32),
        "conv_bb": s * jax.random.normal(jax.random.fold_in(ks[8], 1), (n_layers, hid_dim), jnp.float32),
    }


if __name__ == "__main__":
    INPUT_DIM = 100      # vocab size
    EMB_DIM = 32
    HID_DIM = 32
    N_LAYERS = 2
    KERNEL_SIZE = 3      # must be odd
    MAX_LENGTH = 100
    BATCH = 4
    SEQ_LEN = 16

    key = jax.random.PRNGKey(0)
    k_param, k_src = jax.random.split(key)
    params = init_params(k_param, input_dim=INPUT_DIM, emb_dim=EMB_DIM,
                         hid_dim=HID_DIM, n_layers=N_LAYERS,
                         kernel_size=KERNEL_SIZE, max_length=MAX_LENGTH)
    src = jax.random.randint(k_src, (BATCH, SEQ_LEN), 0, INPUT_DIM, jnp.int32)

    ref_conved, ref_combined = reference_forward(src, params,
                                                 n_layers=N_LAYERS,
                                                 kernel_size=KERNEL_SIZE)

    # f32 MXU-operand path: tight structural/numerical check.
    conved32, combined32 = encoder_forward(src, params, n_layers=N_LAYERS,
                                           kernel_size=KERNEL_SIZE,
                                           compute_dtype=jnp.float32)
    jax.block_until_ready((conved32, combined32))
    assert conved32.shape == (BATCH, SEQ_LEN, EMB_DIM)
    assert combined32.shape == (BATCH, SEQ_LEN, EMB_DIM)
    assert jnp.allclose(conved32, ref_conved, atol=5e-3, rtol=5e-3)
    assert jnp.allclose(combined32, ref_combined, atol=5e-3, rtol=5e-3)

    # bf16 MXU-operand path (default, matches v6e/v7x guidance): looser tolerance.
    conved, combined = encoder_forward(src, params, n_layers=N_LAYERS,
                                       kernel_size=KERNEL_SIZE)
    jax.block_until_ready((conved, combined))
    assert conved.shape == (BATCH, SEQ_LEN, EMB_DIM)
    assert combined.shape == (BATCH, SEQ_LEN, EMB_DIM)
    assert jnp.allclose(conved, ref_conved, atol=3e-2, rtol=3e-2)
    assert jnp.allclose(combined, ref_combined, atol=3e-2, rtol=3e-2)
    print("KERNEL_OK")
</pallas_src>

<mosaic_0001>
module attributes {stable_mosaic.version = 11 : i64} {
  func.func @_encoder_kernel(%arg0: i32, %arg1: memref<32x32xf32, #tpu.memory_space<vmem>>, %arg2: memref<3x32x1xf32, #tpu.memory_space<vmem>>, %arg3: memref<32x32xf32, #tpu.memory_space<vmem>>, %arg4: memref<1x32xf32, #tpu.memory_space<vmem>>, %arg5: memref<2x96x64xf32, #tpu.memory_space<vmem>>, %arg6: memref<2x1x64xf32, #tpu.memory_space<vmem>>, %arg7: memref<32x32xf32, #tpu.memory_space<vmem>>, %arg8: memref<1x32xf32, #tpu.memory_space<vmem>>, %arg9: memref<32x32xf32, #tpu.memory_space<vmem>>, %arg10: memref<32x32xf32, #tpu.memory_space<vmem>>) attributes {dimension_semantics = [#tpu.dimension_semantics<parallel>], iteration_bounds = array<i64: 2>, scalar_prefetch = 0 : i64, scratch_operands = 0 : i64, tpu.core_type = #tpu.core_type<tc>, window_params = [{transform_indices = @transform_0, window_bounds = array<i64: 32, 32>}, {transform_indices = @transform_1, window_bounds = array<i64: 3, 32, 1>}, {pipeline_mode = #tpu.pipeline_mode<synchronous>, transform_indices = @transform_2, window_bounds = array<i64: 32, 32>}, {pipeline_mode = #tpu.pipeline_mode<synchronous>, transform_indices = @transform_3, window_bounds = array<i64: 1, 32>}, {pipeline_mode = #tpu.pipeline_mode<synchronous>, transform_indices = @transform_4, window_bounds = array<i64: 2, 96, 64>}, {pipeline_mode = #tpu.pipeline_mode<synchronous>, transform_indices = @transform_5, window_bounds = array<i64: 2, 1, 64>}, {pipeline_mode = #tpu.pipeline_mode<synchronous>, transform_indices = @transform_6, window_bounds = array<i64: 32, 32>}, {pipeline_mode = #tpu.pipeline_mode<synchronous>, transform_indices = @transform_7, window_bounds = array<i64: 1, 32>}, {transform_indices = @transform_8, window_bounds = array<i64: 32, 32>}, {transform_indices = @transform_9, window_bounds = array<i64: 32, 32>}]} {
    %c0 = arith.constant 0 : index
    %c0_0 = arith.constant 0 : index
    %0 = vector.load %arg1[%c0, %c0_0] : memref<32x32xf32, #tpu.memory_space<vmem>>, vector<32x32xf32>
    %c0_1 = arith.constant 0 : index
    %c0_2 = arith.constant 0 : index
    %1 = vector.load %arg3[%c0_1, %c0_2] : memref<32x32xf32, #tpu.memory_space<vmem>>, vector<32x32xf32>
    %cst = arith.constant dense<0.000000e+00> : vector<32x32xf32>
    %2 = tpu.matmul %0, %1, %cst {dimension_numbers = #tpu.dot_dimension_numbers<[1], [0], [0], [1], [0, 0, 1, 1], [], []>} : vector<32x32xf32>, vector<32x32xf32>, vector<32x32xf32> -> vector<32x32xf32>
    %c0_3 = arith.constant 0 : index
    %c0_4 = arith.constant 0 : index
    %3 = vector.load %arg4[%c0_3, %c0_4] : memref<1x32xf32, #tpu.memory_space<vmem>>, vector<1x32xf32>
    %4 = vector.broadcast %3 : vector<1x32xf32> to vector<32x32xf32>
    %5 = arith.addf %2, %4 : vector<32x32xf32>
    %c0_5 = arith.constant 0 : index
    %c0_6 = arith.constant 0 : index
    %c0_7 = arith.constant 0 : index
    %6 = vector.load %arg2[%c0_5, %c0_6, %c0_7] : memref<3x32x1xf32, #tpu.memory_space<vmem>>, vector<1x32x1xf32>
    %7 = vector.shape_cast %6 : vector<1x32x1xf32> to vector<32x1xf32>
    %c2 = arith.constant 2 : index
    %c0_8 = arith.constant 0 : index
    %c0_9 = arith.constant 0 : index
    %8 = vector.load %arg2[%c2, %c0_8, %c0_9] : memref<3x32x1xf32, #tpu.memory_space<vmem>>, vector<1x32x1xf32>
    %9 = vector.shape_cast %8 : vector<1x32x1xf32> to vector<32x1xf32>
    %c1_i32 = arith.constant 1 : i32
    %10 = tpu.dynamic_rotate %5 by %c1_i32 dim 0 : vector<32x32xf32>, i32 -> vector<32x32xf32>
    %11 = vector.broadcast %7 : vector<32x1xf32> to vector<32x32xf32>
    %12 = arith.mulf %10, %11 : vector<32x32xf32>
    %c31_i32 = arith.constant 31 : i32
    %13 = tpu.dynamic_rotate %5 by %c31_i32 dim 0 : vector<32x32xf32>, i32 -> vector<32x32xf32>
    %14 = vector.broadcast %9 : vector<32x1xf32> to vector<32x32xf32>
    %15 = arith.mulf %13, %14 : vector<32x32xf32>
    %16 = tpu.concatenate %12, %5, %15 in 1 : vector<32x32xf32>, vector<32x32xf32>, vector<32x32xf32> -> vector<32x96xf32>
    %c0_10 = arith.constant 0 : index
    %c0_11 = arith.constant 0 : index
    %c0_12 = arith.constant 0 : index
    %17 = vector.load %arg5[%c0_10, %c0_11, %c0_12] : memref<2x96x64xf32, #tpu.memory_space<vmem>>, vector<1x96x64xf32>
    %18 = vector.shape_cast %17 : vector<1x96x64xf32> to vector<96x64xf32>
    %cst_13 = arith.constant dense<0.000000e+00> : vector<32x64xf32>
    %19 = tpu.matmul %16, %18, %cst_13 {dimension_numbers = #tpu.dot_dimension_numbers<[1], [0], [0], [1], [0, 0, 1, 1], [], []>} : vector<32x96xf32>, vector<96x64xf32>, vector<32x64xf32> -> vector<32x64xf32>
    %c0_14 = arith.constant 0 : index
    %c0_15 = arith.constant 0 : index
    %c0_16 = arith.constant 0 : index
    %20 = vector.load %arg6[%c0_14, %c0_15, %c0_16] : memref<2x1x64xf32, #tpu.memory_space<vmem>>, vector<1x1x64xf32>
    %21 = vector.shape_cast %20 : vector<1x1x64xf32> to vector<1x64xf32>
    %22 = vector.broadcast %21 : vector<1x64xf32> to vector<32x64xf32>
    %23 = arith.addf %19, %22 : vector<32x64xf32>
    %24 = vector.extract_strided_slice %23 {offsets = [0, 0], sizes = [32, 32], strides = [1, 1]} : vector<32x64xf32> to vector<32x32xf32>
    %25 = vector.extract_strided_slice %23 {offsets = [0, 32], sizes = [32, 32], strides = [1, 1]} : vector<32x64xf32> to vector<32x32xf32>
    %26 = arith.negf %25 : vector<32x32xf32>
    %27 = math.exp %26 : vector<32x32xf32>
    %cst_17 = arith.constant 1.000000e+00 : f32
    %28 = vector.broadcast %cst_17 : f32 to vector<32x32xf32>
    %29 = arith.addf %28, %27 : vector<32x32xf32>
    %30 = arith.divf %28, %29 : vector<32x32xf32>
    %31 = arith.mulf %24, %30 : vector<32x32xf32>
    %32 = arith.addf %31, %5 : vector<32x32xf32>
    %cst_18 = arith.constant 0.707106769 : f32
    %33 = vector.broadcast %cst_18 : f32 to vector<32x32xf32>
    %34 = arith.mulf %32, %33 : vector<32x32xf32>
    %c1_i32_19 = arith.constant 1 : i32
    %35 = tpu.dynamic_rotate %34 by %c1_i32_19 dim 0 : vector<32x32xf32>, i32 -> vector<32x32xf32>
    %36 = vector.broadcast %7 : vector<32x1xf32> to vector<32x32xf32>
    %37 = arith.mulf %35, %36 : vector<32x32xf32>
    %c31_i32_20 = arith.constant 31 : i32
    %38 = tpu.dynamic_rotate %34 by %c31_i32_20 dim 0 : vector<32x32xf32>, i32 -> vector<32x32xf32>
    %39 = vector.broadcast %9 : vector<32x1xf32> to vector<32x32xf32>
    %40 = arith.mulf %38, %39 : vector<32x32xf32>
    %41 = tpu.concatenate %37, %34, %40 in 1 : vector<32x32xf32>, vector<32x32xf32>, vector<32x32xf32> -> vector<32x96xf32>
    %c1 = arith.constant 1 : index
    %c0_21 = arith.constant 0 : index
    %c0_22 = arith.constant 0 : index
    %42 = vector.load %arg5[%c1, %c0_21, %c0_22] : memref<2x96x64xf32, #tpu.memory_space<vmem>>, vector<1x96x64xf32>
    %43 = vector.shape_cast %42 : vector<1x96x64xf32> to vector<96x64xf32>
    %cst_23 = arith.constant dense<0.000000e+00> : vector<32x64xf32>
    %44 = tpu.matmul %41, %43, %cst_23 {dimension_numbers = #tpu.dot_dimension_numbers<[1], [0], [0], [1], [0, 0, 1, 1], [], []>} : vector<32x96xf32>, vector<96x64xf32>, vector<32x64xf32> -> vector<32x64xf32>
    %c1_24 = arith.constant 1 : index
    %c0_25 = arith.constant 0 : index
    %c0_26 = arith.constant 0 : index
    %45 = vector.load %arg6[%c1_24, %c0_25, %c0_26] : memref<2x1x64xf32, #tpu.memory_space<vmem>>, vector<1x1x64xf32>
    %46 = vector.shape_cast %45 : vector<1x1x64xf32> to vector<1x64xf32>
    %47 = vector.broadcast %46 : vector<1x64xf32> to vector<32x64xf32>
    %48 = arith.addf %44, %47 : vector<32x64xf32>
    %49 = vector.extract_strided_slice %48 {offsets = [0, 0], sizes = [32, 32], strides = [1, 1]} : vector<32x64xf32> to vector<32x32xf32>
    %50 = vector.extract_strided_slice %48 {offsets = [0, 32], sizes = [32, 32], strides = [1, 1]} : vector<32x64xf32> to vector<32x32xf32>
    %51 = arith.negf %50 : vector<32x32xf32>
    %52 = math.exp %51 : vector<32x32xf32>
    %cst_27 = arith.constant 1.000000e+00 : f32
    %53 = vector.broadcast %cst_27 : f32 to vector<32x32xf32>
    %54 = arith.addf %53, %52 : vector<32x32xf32>
    %55 = arith.divf %53, %54 : vector<32x32xf32>
    %56 = arith.mulf %49, %55 : vector<32x32xf32>
    %57 = arith.addf %56, %34 : vector<32x32xf32>
    %cst_28 = arith.constant 0.707106769 : f32
    %58 = vector.broadcast %cst_28 : f32 to vector<32x32xf32>
    %59 = arith.mulf %57, %58 : vector<32x32xf32>
    %c0_29 = arith.constant 0 : index
    %c0_30 = arith.constant 0 : index
    %60 = vector.load %arg7[%c0_29, %c0_30] : memref<32x32xf32, #tpu.memory_space<vmem>>, vector<32x32xf32>
    %cst_31 = arith.constant dense<0.000000e+00> : vector<32x32xf32>
    %61 = tpu.matmul %59, %60, %cst_31 {dimension_numbers = #tpu.dot_dimension_numbers<[1], [0], [0], [1], [0, 0, 1, 1], [], []>} : vector<32x32xf32>, vector<32x32xf32>, vector<32x32xf32> -> vector<32x32xf32>
    %c0_32 = arith.constant 0 : index
    %c0_33 = arith.constant 0 : index
    %62 = vector.load %arg8[%c0_32, %c0_33] : memref<1x32xf32, #tpu.memory_space<vmem>>, vector<1x32xf32>
    %63 = vector.broadcast %62 : vector<1x32xf32> to vector<32x32xf32>
    %64 = arith.addf %61, %63 : vector<32x32xf32>
    %c0_34 = arith.constant 0 : index
    %c0_35 = arith.constant 0 : index
    %65 = vector.load %arg9[%c0_34, %c0_35] : memref<32x32xf32, #tpu.memory_space<vmem>>, vector<32x32xf32>
    tpu.vector_store %arg9[%c0_34, %c0_35], %64 {strides = array<i32>} : memref<32x32xf32, #tpu.memory_space<vmem>>, vector<32x32xf32>,
    %66 = arith.addf %64, %0 : vector<32x32xf32>
    %cst_36 = arith.constant 0.707106769 : f32
    %67 = vector.broadcast %cst_36 : f32 to vector<32x32xf32>
    %68 = arith.mulf %66, %67 : vector<32x32xf32>
    %c0_37 = arith.constant 0 : index
    %c0_38 = arith.constant 0 : index
    %69 = vector.load %arg10[%c0_37, %c0_38] : memref<32x32xf32, #tpu.memory_space<vmem>>, vector<32x32xf32>
    tpu.vector_store %arg10[%c0_37, %c0_38], %68 {strides = array<i32>} : memref<32x32xf32, #tpu.memory_space<vmem>>, vector<32x32xf32>,
    return
  }
  func.func @transform_0(%arg0: i32) -> (i32, i32) {
    %c0_i32 = arith.constant 0 : i32
    %c0_i32_0 = arith.constant 0 : i32
    return %arg0, %c0_i32 : i32, i32
  }
  func.func @transform_1(%arg0: i32) -> (i32, i32, i32) {
    %c0_i32 = arith.constant 0 : i32
    %c0_i32_0 = arith.constant 0 : i32
    %c0_i32_1 = arith.constant 0 : i32
    return %c0_i32, %arg0, %c0_i32_0 : i32, i32, i32
  }
  func.func @transform_2(%arg0: i32) -> (i32, i32) {
    %c0_i32 = arith.constant 0 : i32
    %c0_i32_0 = arith.constant 0 : i32
    %c0_i32_1 = arith.constant 0 : i32
    return %c0_i32, %c0_i32_0 : i32, i32
  }
  func.func @transform_3(%arg0: i32) -> (i32, i32) {
    %c0_i32 = arith.constant 0 : i32
    %c0_i32_0 = arith.constant 0 : i32
    %c0_i32_1 = arith.constant 0 : i32
    return %c0_i32, %c0_i32_0 : i32, i32
  }
  func.func @transform_4(%arg0: i32) -> (i32, i32, i32) {
    %c0_i32 = arith.constant 0 : i32
    %c0_i32_0 = arith.constant 0 : i32
    %c0_i32_1 = arith.constant 0 : i32
    %c0_i32_2 = arith.constant 0 : i32
    return %c0_i32, %c0_i32_0, %c0_i32_1 : i32, i32, i32
  }
  func.func @transform_5(%arg0: i32) -> (i32, i32, i32) {
    %c0_i32 = arith.constant 0 : i32
    %c0_i32_0 = arith.constant 0 : i32
    %c0_i32_1 = arith.constant 0 : i32
    %c0_i32_2 = arith.constant 0 : i32
    return %c0_i32, %c0_i32_0, %c0_i32_1 : i32, i32, i32
  }
  func.func @transform_6(%arg0: i32) -> (i32, i32) {
    %c0_i32 = arith.constant 0 : i32
    %c0_i32_0 = arith.constant 0 : i32
    %c0_i32_1 = arith.constant 0 : i32
    return %c0_i32, %c0_i32_0 : i32, i32
  }
  func.func @transform_7(%arg0: i32) -> (i32, i32) {
    %c0_i32 = arith.constant 0 : i32
    %c0_i32_0 = arith.constant 0 : i32
    %c0_i32_1 = arith.constant 0 : i32
    return %c0_i32, %c0_i32_0 : i32, i32
  }
  func.func @transform_8(%arg0: i32) -> (i32, i32) {
    %c0_i32 = arith.constant 0 : i32
    %c0_i32_0 = arith.constant 0 : i32
    return %arg0, %c0_i32 : i32, i32
  }
  func.func @transform_9(%arg0: i32) -> (i32, i32) {
    %c0_i32 = arith.constant 0 : i32
    %c0_i32_0 = arith.constant 0 : i32
    return %arg0, %c0_i32 : i32, i32
  }
}

</mosaic_0001>

<llo_original>
// kernel: tpu_custom_call.1
$region0: #{tpu_custom_call.1}
  #allocation0 [shape = 'u32[]', space=smem, size = 0x4, offset = 0x4, fixed_abs, tag = 'smem constant byte address 0x4 - core index']
  #allocation1 [shape = 'u32[144,128]{1,0:T(1,128)}', space=vmem, size = 0x12000, scoped, tag = 'internal scratch']
  %s0 = inlined_call_operand.vmem [shape: f32[64,32], index: 0, kind: input, shape index: {}]
  %s1 = inlined_call_operand.vmem [shape: f32[3,64,1], index: 1, kind: input, shape index: {}]
  %s2 = inlined_call_operand.vmem [shape: f32[32,32], index: 2, kind: input, shape index: {}]
  %s3 = inlined_call_operand.vmem [shape: f32[1,32], index: 3, kind: input, shape index: {}]
  %s4 = inlined_call_operand.vmem [shape: f32[2,96,64], index: 4, kind: input, shape index: {}]
  %s5 = inlined_call_operand.vmem [shape: f32[2,1,64], index: 5, kind: input, shape index: {}]
  %s6 = inlined_call_operand.vmem [shape: f32[32,32], index: 6, kind: input, shape index: {}]
  %s7 = inlined_call_operand.vmem [shape: f32[1,32], index: 7, kind: input, shape index: {}]
  %s8 = inlined_call_operand.vmem [shape: f32[64,32], index: 8, kind: output, shape index: {0}]
  %s9 = inlined_call_operand.vmem [shape: f32[64,32], index: 9, kind: output, shape index: {1}]
  %10 = xla_tuple %s8, %s9
  %s11 = sld [smem:[#allocation0]]
  $region111: #{tpu_custom_call.1} parent=0
    _
  %s13 = ssub.s32 1, %s11
  %s14 = scalar_select 0, %s13, %s11
  $region1: #{tpu_custom_call.1} parent=0
    #allocation2 [shape = 'u8[98304]{0}', space=vmem, size = 0x18000, scoped, tag = 'input window, operand 1']
    loop: start=0, step=1, limit=4
    $region2: #{tpu_custom_call.1} parent=1 // loop_pre_header
      _
    $region3: #{tpu_custom_call.1} parent=1 // loop_header
      %s16 = sphi 0, %s20
      %p17 = scmp.ge.s32.totalorder %s16, 4
      %s26 = sphi 0, %s28
      %s29 = sphi 0, %s26
      %s30 = sphi 0, %s29
      %s46 = sphi 0, %s30
      %s52 = sphi 0, %s54
      %s55 = sphi 0, %s52
      %s56 = sphi 0, %s55
      %s72 = sphi 0, %s56
      %s76 = sphi 0, %s76
      %s78 = sphi 0, %s76
      %s79 = sphi 0, %s78
      %s93 = sphi 0, %s79
      %s97 = sphi 0, %s97
      %s99 = sphi 0, %s97
      %s100 = sphi 0, %s99
      %s114 = sphi 0, %s100
      %s118 = sphi 0, %s118
      %s120 = sphi 0, %s118
      %s121 = sphi 0, %s120
      %s135 = sphi 0, %s121
      %s139 = sphi 0, %s139
      %s141 = sphi 0, %s139
      %s142 = sphi 0, %s141
      %s156 = sphi 0, %s142
      %s160 = sphi 0, %s160
      %s162 = sphi 0, %s160
      %s163 = sphi 0, %s162
      %s177 = sphi 0, %s163
      %s181 = sphi 0, %s181
      %s183 = sphi 0, %s181
      %s184 = sphi 0, %s183
      %s198 = sphi 0, %s184
      %s204 = sphi 0, %s206
      %s207 = sphi 0, %s204
      %s208 = sphi 0, %s207
      %s224 = sphi 0, %s208
      %s230 = sphi 0, %s232
      %s233 = sphi 0, %s230
      %s234 = sphi 0, %s233
      %s250 = sphi 0, %s234
    $region4: #{tpu_custom_call.1} parent=1 // loop_header_branch
      %19 = sbr.rel (%p17) target = $region8
    $region5: #{tpu_custom_call.1} parent=1 // loop_body
      %s21 = ssub.s32 %s16, 1
      %s22 = ssub.s32 %s16, 2
      %s23 = sadd.s32 %s16, 1
      %s24 = ssub.s32 %s16, %s23
      %p25 = scmp.eq.s32.totalorder %s24, 0
      %s27 = sadd.s32 %s26, 1
      %s28 = scalar_select %p25, %s26, %s27
      %p31 = pneg %p25
      %p32 = scmp.eq.s32.totalorder %s16, 1
      %p33 = por %p31, %p32
      %p34 = scmp.ne.s32.totalorder %s26, %s29
      %p35 = scmp.eq.s32.totalorder %s16, 0
      %p36 = por %p34, %p35
      %p37 = scmp.ne.s32.totalorder %s26, %s29
      %p38 = scmp.eq.s32.totalorder %s21, 1
      %p39 = por %p37, %p38
      %p40 = scmp.ne.s32.totalorder %s29, %s30
      %p41 = scmp.eq.s32.totalorder %s21, 0
      %p42 = por %p40, %p41
      %p43 = scmp.ne.s32.totalorder %s29, %s30
      %p44 = scmp.eq.s32.totalorder %s22, 1
      %p45 = por %p43, %p44
      %p47 = scmp.ne.s32.totalorder %s30, %s46
      %p48 = scmp.eq.s32.totalorder %s22, 0
      %p49 = por %p47, %p48
      %s50 = ssub.s32 %s16, %s23
      %p51 = scmp.eq.s32.totalorder %s50, 0
      %s53 = sadd.s32 %s52, 1
      %s54 = scalar_select %p51, %s52, %s53
      %p57 = pneg %p51
      %p58 = scmp.eq.s32.totalorder %s16, 1
      %p59 = por %p57, %p58
      %p60 = scmp.ne.s32.totalorder %s52, %s55
      %p61 = scmp.eq.s32.totalorder %s16, 0
      %p62 = por %p60, %p61
      %p63 = scmp.ne.s32.totalorder %s52, %s55
      %p64 = scmp.eq.s32.totalorder %s21, 1
      %p65 = por %p63, %p64
      %p66 = scmp.ne.s32.totalorder %s55, %s56
      %p67 = scmp.eq.s32.totalorder %s21, 0
      %p68 = por %p66, %p67
      %p69 = scmp.ne.s32.totalorder %s55, %s56
      %p70 = scmp.eq.s32.totalorder %s22, 1
      %p71 = por %p69, %p70
      %p73 = scmp.ne.s32.totalorder %s56, %s72
      %p74 = scmp.eq.s32.totalorder %s22, 0
      %p75 = por %p73, %p74
      %s77 = sadd.s32 %s76, 1
      %p80 = scmp.eq.s32.totalorder %s16, 1
      %p81 = scmp.ne.s32.totalorder %s76, %s78
      %p82 = scmp.eq.s32.totalorder %s16, 0
      %p83 = por %p81, %p82
      %p84 = scmp.ne.s32.totalorder %s76, %s78
      %p85 = scmp.eq.s32.totalorder %s21, 1
      %p86 = por %p84, %p85
      %p87 = scmp.ne.s32.totalorder %s78, %s79
      %p88 = scmp.eq.s32.totalorder %s21, 0
      %p89 = por %p87, %p88
      %p90 = scmp.ne.s32.totalorder %s78, %s79
      %p91 = scmp.eq.s32.totalorder %s22, 1
      %p92 = por %p90, %p91
      %p94 = scmp.ne.s32.totalorder %s79, %s93
      %p95 = scmp.eq.s32.totalorder %s22, 0
      %p96 = por %p94, %p95
      %s98 = sadd.s32 %s97, 1
      %p101 = scmp.eq.s32.totalorder %s16, 1
      %p102 = scmp.ne.s32.totalorder %s97, %s99
      %p103 = scmp.eq.s32.totalorder %s16, 0
      %p104 = por %p102, %p103
      %p105 = scmp.ne.s32.totalorder %s97, %s99
      %p106 = scmp.eq.s32.totalorder %s21, 1
      %p107 = por %p105, %p106
      %p108 = scmp.ne.s32.totalorder %s99, %s100
      %p109 = scmp.eq.s32.totalorder %s21, 0
      %p110 = por %p108, %p109
      %p111 = scmp.ne.s32.totalorder %s99, %s100
      %p112 = scmp.eq.s32.totalorder %s22, 1
      %p113 = por %p111, %p112
      %p115 = scmp.ne.s32.totalorder %s100, %s114
      %p116 = scmp.eq.s32.totalorder %s22, 0
      %p117 = por %p115, %p116
      %s119 = sadd.s32 %s118, 1
      %p122 = scmp.eq.s32.totalorder %s16, 1
      %p123 = scmp.ne.s32.totalorder %s118, %s120
      %p124 = scmp.eq.s32.totalorder %s16, 0
      %p125 = por %p123, %p124
      %p126 = scmp.ne.s32.totalorder %s118, %s120
      %p127 = scmp.eq.s32.totalorder %s21, 1
      %p128 = por %p126, %p127
      %p129 = scmp.ne.s32.totalorder %s120, %s121
      %p130 = scmp.eq.s32.totalorder %s21, 0
      %p131 = por %p129, %p130
      %p132 = scmp.ne.s32.totalorder %s120, %s121
      %p133 = scmp.eq.s32.totalorder %s22, 1
      %p134 = por %p132, %p133
      %p136 = scmp.ne.s32.totalorder %s121, %s135
      %p137 = scmp.eq.s32.totalorder %s22, 0
      %p138 = por %p136, %p137
      %s140 = sadd.s32 %s139, 1
      %p143 = scmp.eq.s32.totalorder %s16, 1
      %p144 = scmp.ne.s32.totalorder %s139, %s141
      %p145 = scmp.eq.s32.totalorder %s16, 0
      %p146 = por %p144, %p145
      %p147 = scmp.ne.s32.totalorder %s139, %s141
      %p148 = scmp.eq.s32.totalorder %s21, 1
      %p149 = por %p147, %p148
      %p150 = scmp.ne.s32.totalorder %s141, %s142
      %p151 = scmp.eq.s32.totalorder %s21, 0
      %p152 = por %p150, %p151
      %p153 = scmp.ne.s32.totalorder %s141, %s142
      %p154 = scmp.eq.s32.totalorder %s22, 1
      %p155 = por %p153, %p154
      %p157 = scmp.ne.s32.totalorder %s142, %s156
      %p158 = scmp.eq.s32.totalorder %s22, 0
      %p159 = por %p157, %p158
      %s161 = sadd.s32 %s160, 1
      %p164 = scmp.eq.s32.totalorder %s16, 1
      %p165 = scmp.ne.s32.totalorder %s160, %s162
      %p166 = scmp.eq.s32.totalorder %s16, 0
      %p167 = por %p165, %p166
      %p168 = scmp.ne.s32.totalorder %s160, %s162
      %p169 = scmp.eq.s32.totalorder %s21, 1
      %p170 = por %p168, %p169
      %p171 = scmp.ne.s32.totalorder %s162, %s163
      %p172 = scmp.eq.s32.totalorder %s21, 0
      %p173 = por %p171, %p172
      %p174 = scmp.ne.s32.totalorder %s162, %s163
      %p175 = scmp.eq.s32.totalorder %s22, 1
      %p176 = por %p174, %p175
      %p178 = scmp.ne.s32.totalorder %s163, %s177
      %p179 = scmp.eq.s32.totalorder %s22, 0
      %p180 = por %p178, %p179
      %s182 = sadd.s32 %s181, 1
      %p185 = scmp.eq.s32.totalorder %s16, 1
      %p186 = scmp.ne.s32.totalorder %s181, %s183
      %p187 = scmp.eq.s32.totalorder %s16, 0
      %p188 = por %p186, %p187
      %p189 = scmp.ne.s32.totalorder %s181, %s183
      %p190 = scmp.eq.s32.totalorder %s21, 1
      %p191 = por %p189, %p190
      %p192 = scmp.ne.s32.totalorder %s183, %s184
      %p193 = scmp.eq.s32.totalorder %s21, 0
      %p194 = por %p192, %p193
      %p195 = scmp.ne.s32.totalorder %s183, %s184
      %p196 = scmp.eq.s32.totalorder %s22, 1
      %p197 = por %p195, %p196
      %p199 = scmp.ne.s32.totalorder %s184, %s198
      %p200 = scmp.eq.s32.totalorder %s22, 0
      %p201 = por %p199, %p200
      %s202 = ssub.s32 %s16, %s23
      %p203 = scmp.eq.s32.totalorder %s202, 0
      %s205 = sadd.s32 %s204, 1
      %s206 = scalar_select %p203, %s204, %s205
      %p209 = pneg %p203
      %p210 = scmp.eq.s32.totalorder %s16, 1
      %p211 = por %p209, %p210
      %p212 = scmp.ne.s32.totalorder %s204, %s207
      %p213 = scmp.eq.s32.totalorder %s16, 0
      %p214 = por %p212, %p213
      %p215 = scmp.ne.s32.totalorder %s204, %s207
      %p216 = scmp.eq.s32.totalorder %s21, 1
      %p217 = por %p215, %p216
      %p218 = scmp.ne.s32.totalorder %s207, %s208
      %p219 = scmp.eq.s32.totalorder %s21, 0
      %p220 = por %p218, %p219
      %p221 = scmp.ne.s32.totalorder %s207, %s208
      %p222 = scmp.eq.s32.totalorder %s22, 1
      %p223 = por %p221, %p222
      %p225 = scmp.ne.s32.totalorder %s208, %s224
      %p226 = scmp.eq.s32.totalorder %s22, 0
      %p227 = por %p225, %p226
      %s228 = ssub.s32 %s16, %s23
      %p229 = scmp.eq.s32.totalorder %s228, 0
      %s231 = sadd.s32 %s230, 1
      %s232 = scalar_select %p229, %s230, %s231
      %p235 = pneg %p229
      %p236 = scmp.eq.s32.totalorder %s16, 1
      %p237 = por %p235, %p236
      %p238 = scmp.ne.s32.totalorder %s230, %s233
      %p239 = scmp.eq.s32.totalorder %s16, 0
      %p240 = por %p238, %p239
      %p241 = scmp.ne.s32.totalorder %s230, %s233
      %p242 = scmp.eq.s32.totalorder %s21, 1
      %p243 = por %p241, %p242
      %p244 = scmp.ne.s32.totalorder %s233, %s234
      %p245 = scmp.eq.s32.totalorder %s21, 0
      %p246 = por %p244, %p245
      %p247 = scmp.ne.s32.totalorder %s233, %s234
      %p248 = scmp.eq.s32.totalorder %s22, 1
      %p249 = por %p247, %p248
      %p251 = scmp.ne.s32.totalorder %s234, %s250
      %p252 = scmp.eq.s32.totalorder %s22, 0
      %p253 = por %p251, %p252
      %p254 = scmp.le.s32.totalorder 1, %s16
      %p255 = scmp.lt.s32.totalorder %s16, 3
      %p256 = pnand %p254, %p255
      %p257 = pneg %p256
      // Predicated region
      $region9: #{tpu_custom_call.1} parent=5 // pred_check
        _
      $region10: #{tpu_custom_call.1} parent=5 // pred_check_branch
        %259 = sbr.rel (%p256) target = $region12
      $region11: #{tpu_custom_call.1} parent=5 // pred_region
        %s260 = ssub.s32 %s16, 1
        // Predicated region
        $region13: #{tpu_custom_call.1} parent=11 // pred_check
          %p261 = pneg %p89
        $region14: #{tpu_custom_call.1} parent=11 // pred_check_branch
          %263 = sbr.rel (%p261) target = $region16
        $region15: #{tpu_custom_call.1} parent=11 // pred_region
          _
        $region16: #{tpu_custom_call.1} parent=11 // pred_fallthru
          _
        // Predicated region
        $region17: #{tpu_custom_call.1} parent=11 // pred_check
          %p264 = pneg %p110
        $region18: #{tpu_custom_call.1} parent=11 // pred_check_branch
          %266 = sbr.rel (%p264) target = $region20
        $region19: #{tpu_custom_call.1} parent=11 // pred_region
          _
        $region20: #{tpu_custom_call.1} parent=11 // pred_fallthru
          _
        // Predicated region
        $region21: #{tpu_custom_call.1} parent=11 // pred_check
          %p267 = pneg %p131
        $region22: #{tpu_custom_call.1} parent=11 // pred_check_branch
          %269 = sbr.rel (%p267) target = $region24
        $region23: #{tpu_custom_call.1} parent=11 // pred_region
          _
        $region24: #{tpu_custom_call.1} parent=11 // pred_fallthru
          _
        // Predicated region
        $region25: #{tpu_custom_call.1} parent=11 // pred_check
          %p270 = pneg %p152
        $region26: #{tpu_custom_call.1} parent=11 // pred_check_branch
          %272 = sbr.rel (%p270) target = $region28
        $region27: #{tpu_custom_call.1} parent=11 // pred_region
          _
        $region28: #{tpu_custom_call.1} parent=11 // pred_fallthru
          _
        // Predicated region
        $region29: #{tpu_custom_call.1} parent=11 // pred_check
          %p273 = pneg %p173
        $region30: #{tpu_custom_call.1} parent=11 // pred_check_branch
          %275 = sbr.rel (%p273) target = $region32
        $region31: #{tpu_custom_call.1} parent=11 // pred_region
          _
        $region32: #{tpu_custom_call.1} parent=11 // pred_fallthru
          _
        // Predicated region
        $region33: #{tpu_custom_call.1} parent=11 // pred_check
          %p276 = pneg %p194
        $region34: #{tpu_custom_call.1} parent=11 // pred_check_branch
          %278 = sbr.rel (%p276) target = $region36
        $region35: #{tpu_custom_call.1} parent=11 // pred_region
          _
        $region36: #{tpu_custom_call.1} parent=11 // pred_fallthru
          _
      $region12: #{tpu_custom_call.1} parent=5 // pred_fallthru
        _
      %p279 = scmp.lt.s32.totalorder %s16, 2
      // Predicated region
      $region37: #{tpu_custom_call.1} parent=5 // pred_check
        %p280 = pneg %p279
      $region38: #{tpu_custom_call.1} parent=5 // pred_check_branch
        %282 = sbr.rel (%p280) target = $region40
      $region39: #{tpu_custom_call.1} parent=5 // pred_region
        // Predicated region
        $region41: #{tpu_custom_call.1} parent=39 // pred_check
          %p283 = pneg %p36
        $region42: #{tpu_custom_call.1} parent=39 // pred_check_branch
          %285 = sbr.rel (%p283) target = $region44
        $region43: #{tpu_custom_call.1} parent=39 // pred_region
          %s286 = smul.u32 4, %s16
          %p287 = scmp.lt.s32.totalorder %s286, 7
          %s288 = scalar_select %p287, %s286, 7
          %s289 = smul.addr %s288, 8
          %s290 = scalar_lea.vmem %s0, %s289
          %s291 = smul.u32 4, %s16
        $region44: #{tpu_custom_call.1} parent=39 // pred_fallthru
          _
        // Predicated region
        $region45: #{tpu_custom_call.1} parent=39 // pred_check
          %p292 = pneg %p62
        $region46: #{tpu_custom_call.1} parent=39 // pred_check_branch
          %294 = sbr.rel (%p292) target = $region48
        $region47: #{tpu_custom_call.1} parent=39 // pred_region
          %s295 = sand.u32 %s52, 1
          %s296 = sand.u32 %s52, 1
          %s297 = smul.addr %s296, 96
          %s298 = scalar_lea.vmem [#allocation2], %s297
          %s299 = smul.u32 4, %s16
          %s300 = smul.addr %s299, 8
          %s301 = scalar_lea.vmem %s1, %s300
          // Predicated region
          $region49: #{tpu_custom_call.1} parent=47 // pred_check
            _
          $region50: #{tpu_custom_call.1} parent=47 // pred_check_branch
            %303 = sbr.rel (0) target = $region52
          $region51: #{tpu_custom_call.1} parent=47 // pred_region
            // Predicated region
            $region53: #{tpu_custom_call.1} parent=51 // pred_check
              _
            $region54: #{tpu_custom_call.1} parent=51 // pred_check_branch
              %305 = sbr.rel (0) target = $region56
            $region55: #{tpu_custom_call.1} parent=51 // pred_region
              // Predicated region
              $region68: #{tpu_custom_call.1} parent=55 // pred_check
                _
              $region69: #{tpu_custom_call.1} parent=55 // pred_check_branch
                %342 = sbr.rel (0) target = $region71
              $region70: #{tpu_custom_call.1} parent=55 // pred_region
                loop: start=0, step=1, limit=1
                $region72: #{tpu_custom_call.1} parent=70 // loop_pre_header
                  _
                $region73: #{tpu_custom_call.1} parent=70 // loop_header
                  %s344 = sphi 0, %s348
                  %p345 = scmp.ge.s32.totalorder %s344, 1
                  %s349 = sphi %s301, %s301
                  %s350 = sphi %s298, %s298
                $region74: #{tpu_custom_call.1} parent=70 // loop_header_branch
                  %347 = sbr.rel (%p345) target = $region78
                $region75: #{tpu_custom_call.1} parent=70 // loop_body
                  %v351 = vld [vmem:[%s349] sm:$0xff]
                  %352 = vst [vmem:[%s350] sm:$0xff] %v351
                  %v353 = vld [vmem:[%s349 + $0x8] sm:$0xff]
                  %354 = vst [vmem:[%s350 + $0x8] sm:$0xff] %v353
                  %v355 = vld [vmem:[%s349 + $0x10] sm:$0xff]
                  %356 = vst [vmem:[%s350 + $0x10] sm:$0xff] %v355
                  %v357 = vld [vmem:[%s349 + $0x18] sm:$0xff]
                  %358 = vst [vmem:[%s350 + $0x18] sm:$0xff] %v357
                  %v359 = vld [vmem:[%s349 + $0x40] sm:$0xff]
                  %360 = vst [vmem:[%s350 + $0x20] sm:$0xff] %v359
                  %v361 = vld [vmem:[%s349 + $0x48] sm:$0xff]
                  %362 = vst [vmem:[%s350 + $0x28] sm:$0xff] %v361
                  %v363 = vld [vmem:[%s349 + $0x50] sm:$0xff]
                  %364 = vst [vmem:[%s350 + $0x30] sm:$0xff] %v363
                  %v365 = vld [vmem:[%s349 + $0x58] sm:$0xff]
                  %366 = vst [vmem:[%s350 + $0x38] sm:$0xff] %v365
                  %v367 = vld [vmem:[%s349 + $0x80] sm:$0xff]
                  %368 = vst [vmem:[%s350 + $0x40] sm:$0xff] %v367
                  %v369 = vld [vmem:[%s349 + $0x88] sm:$0xff]
                  %370 = vst [vmem:[%s350 + $0x48] sm:$0xff] %v369
                  %v371 = vld [vmem:[%s349 + $0x90] sm:$0xff]
                  %372 = vst [vmem:[%s350 + $0x50] sm:$0xff] %v371
                  %v373 = vld [vmem:[%s349 + $0x98] sm:$0xff]
                  %374 = vst [vmem:[%s350 + $0x58] sm:$0xff] %v373
                $region76: #{tpu_custom_call.1} parent=70 // loop_footer
                  %s348 = sadd.s32 1, %s344
                $region77: #{tpu_custom_call.1} parent=70 // loop_footer_branch
                  %343 = sbr.rel target = $region73
                $region78: #{tpu_custom_call.1} parent=70 // loop_exit
                  _
              $region71: #{tpu_custom_call.1} parent=55 // pred_fallthru
                _
              // Predicated region
              $region79: #{tpu_custom_call.1} parent=55 // pred_check
                _
              $region80: #{tpu_custom_call.1} parent=55 // pred_check_branch
                %376 = sbr.rel target = $region82
              $region81: #{tpu_custom_call.1} parent=55 // pred_region
                _
              $region82: #{tpu_custom_call.1} parent=55 // pred_fallthru
                _
            $region56: #{tpu_custom_call.1} parent=51 // pred_fallthru
              _
            // Predicated region
            $region57: #{tpu_custom_call.1} parent=51 // pred_check
              _
            $region58: #{tpu_custom_call.1} parent=51 // pred_check_branch
              %307 = sbr.rel target = $region60
            $region59: #{tpu_custom_call.1} parent=51 // pred_region
              loop: start=0, step=1, limit=1
              $region61: #{tpu_custom_call.1} parent=59 // loop_pre_header
                _
              $region62: #{tpu_custom_call.1} parent=59 // loop_header
                %s310 = sphi 0, %s314
                %p311 = scmp.ge.s32.totalorder %s310, 1
                %s315 = sphi %s301, %s301
                %s316 = sphi %s298, %s298
              $region63: #{tpu_custom_call.1} parent=59 // loop_header_branch
                %313 = sbr.rel (%p311) target = $region67
              $region64: #{tpu_custom_call.1} parent=59 // loop_body
                %v317 = vld [vmem:[%s315] sm:$0xff]
                %318 = vst [vmem:[%s316] sm:$0xff] %v317
                %v319 = vld [vmem:[%s315 + $0x8] sm:$0xff]
                %320 = vst [vmem:[%s316 + $0x8] sm:$0xff] %v319
                %v321 = vld [vmem:[%s315 + $0x10] sm:$0xff]
                %322 = vst [vmem:[%s316 + $0x10] sm:$0xff] %v321
                %v323 = vld [vmem:[%s315 + $0x18] sm:$0xff]
                %324 = vst [vmem:[%s316 + $0x18] sm:$0xff] %v323
                %v325 = vld [vmem:[%s315 + $0x40] sm:$0xff]
                %326 = vst [vmem:[%s316 + $0x20] sm:$0xff] %v325
                %v327 = vld [vmem:[%s315 + $0x48] sm:$0xff]
                %328 = vst [vmem:[%s316 + $0x28] sm:$0xff] %v327
                %v329 = vld [vmem:[%s315 + $0x50] sm:$0xff]
                %330 = vst [vmem:[%s316 + $0x30] sm:$0xff] %v329
                %v331 = vld [vmem:[%s315 + $0x58] sm:$0xff]
                %332 = vst [vmem:[%s316 + $0x38] sm:$0xff] %v331
                %v333 = vld [vmem:[%s315 + $0x80] sm:$0xff]
                %334 = vst [vmem:[%s316 + $0x40] sm:$0xff] %v333
                %v335 = vld [vmem:[%s315 + $0x88] sm:$0xff]
                %336 = vst [vmem:[%s316 + $0x48] sm:$0xff] %v335
                %v337 = vld [vmem:[%s315 + $0x90] sm:$0xff]
                %338 = vst [vmem:[%s316 + $0x50] sm:$0xff] %v337
                %v339 = vld [vmem:[%s315 + $0x98] sm:$0xff]
                %340 = vst [vmem:[%s316 + $0x58] sm:$0xff] %v339
              $region65: #{tpu_custom_call.1} parent=59 // loop_footer
                %s314 = sadd.s32 1, %s310
              $region66: #{tpu_custom_call.1} parent=59 // loop_footer_branch
                %309 = sbr.rel target = $region62
              $region67: #{tpu_custom_call.1} parent=59 // loop_exit
                _
            $region60: #{tpu_custom_call.1} parent=51 // pred_fallthru
              _
          $region52: #{tpu_custom_call.1} parent=47 // pred_fallthru
            _
          %377 = vnop
        $region48: #{tpu_custom_call.1} parent=39 // pred_fallthru
          _
      $region40: #{tpu_custom_call.1} parent=5 // pred_fallthru
        _
      %p378 = scmp.le.s32.totalorder 1, %s16
      %p379 = scmp.lt.s32.totalorder %s16, 3
      %p380 = pnand %p378, %p379
      %p381 = pneg %p380
      // Predicated region
      $region83: #{tpu_custom_call.1} parent=5 // pred_check
        _
      $region84: #{tpu_custom_call.1} parent=5 // pred_check_branch
        %383 = sbr.rel (%p380) target = $region86
      $region85: #{tpu_custom_call.1} parent=5 // pred_region
        %s384 = ssub.s32 %s16, 1
        %s385 = sand.u32 %s55, 1
        %s386 = sand.u32 %s55, 1
        %s387 = smul.addr %s386, 96
        %s388 = scalar_lea.vmem [#allocation2], %s387
        // Predicated region
        $region87: #{tpu_custom_call.1} parent=85 // pred_check
          %p389 = pneg %p68
        $region88: #{tpu_custom_call.1} parent=85 // pred_check_branch
          %391 = sbr.rel (%p389) target = $region90
        $region89: #{tpu_custom_call.1} parent=85 // pred_region
          _
        $region90: #{tpu_custom_call.1} parent=85 // pred_fallthru
          _
        %s392 = smul.u32 4, %s21
        %p393 = scmp.lt.s32.totalorder %s392, 7
        %s394 = scalar_select %p393, %s392, 7
        %s395 = smul.addr %s394, 8
        %s396 = scalar_lea.vmem %s0, %s395
        %p397 = pneg %p42
        %p398 = pneg %p39
        %s399 = sand.u32 %s55, 1
        %s400 = sand.u32 %s55, 1
        %s401 = smul.addr %s400, 96
        %s402 = scalar_lea.vmem [#allocation2], %s401
        %p403 = pneg %p68
        %p404 = pneg %p65
        %p405 = pneg %p89
        %p406 = pneg %p86
        %p407 = pneg %p110
        %p408 = pneg %p107
        %p409 = pneg %p131
        %p410 = pneg %p128
        %p411 = pneg %p152
        %p412 = pneg %p149
        %p413 = pneg %p173
        %p414 = pneg %p170
        %p415 = pneg %p194
        %p416 = pneg %p191
        %p417 = pneg %p220
        %p418 = pneg %p217
        %s419 = smul.u32 4, %s21
        %p420 = scmp.lt.s32.totalorder %s419, 7
        %s421 = scalar_select %p420, %s419, 7
        %s422 = smul.addr %s421, 8
        %s423 = scalar_lea.vmem %s8, %s422
        %p424 = pneg %p246
        %p425 = pneg %p243
        %s426 = smul.u32 4, %s21
        %p427 = scmp.lt.s32.totalorder %s426, 7
        %s428 = scalar_select %p427, %s426, 7
        %s429 = smul.addr %s428, 8
        %s430 = scalar_lea.vmem %s9, %s429
        %s431 = smul.u32 4, %s21
        %p432 = scmp.lt.s32.totalorder %s431, 7
        %s433 = scalar_select %p432, %s431, 7
        %s434 = smul.addr %s433, 8
        %s435 = scalar_lea.vmem %s0, %s434
        %s436 = smul.u32 4, %s21
        %s437 = smul.u32 4, %s21
        %s438 = smul.u32 4, %s21
        %p439 = scmp.lt.s32.totalorder %s438, 7
        %s440 = scalar_select %p439, %s438, 7
        %s441 = smul.addr %s440, 8
        %s442 = scalar_lea.vmem %s8, %s441
        %s443 = smul.u32 4, %s21
        %s444 = smul.u32 4, %s21
        %p445 = scmp.lt.s32.totalorder %s444, 7
        %s446 = scalar_select %p445, %s444, 7
        %s447 = smul.addr %s446, 8
        %s448 = scalar_lea.vmem %s9, %s447
        %s449 = smul.u32 4, %s21
        %v450 = vld [vmem:[%s435] sm:$0xff]
        %v451 = vld [vmem:[%s435 + $0x8] sm:$0xff]
        %v452 = vld [vmem:[%s435 + $0x10] sm:$0xff]
        %v453 = vld [vmem:[%s435 + $0x18] sm:$0xff]
        %v454 = vld [vmem:[%s2] sm:$0xff]
        %v455 = vld [vmem:[%s2 + $0x8] sm:$0xff]
        %v456 = vld [vmem:[%s2 + $0x10] sm:$0xff]
        %v457 = vld [vmem:[%s2 + $0x18] sm:$0xff]
        %v458 = vld [vmem:[%s3] sm:$0x1]
        %v460 = vlaneseq
        %v461 = vshrl.u32 %v460, 7
        %v462 = vsub.s32 0, %v461
        %v463 = vrot.slane %v458, %v462
        %vm465 = vcmask 261120
        %v467 = vsel %vm465, %v450, 0
        %v470 = vsel %vm465, %v451, 0
        %v473 = vsel %vm465, %v452, 0
        %v476 = vsel %vm465, %v453, 0
        %478 = vmatprep.subr.mxu0 0.0
        %479 = vmatpush1.msra.mxu0 %v454
        %480 = vmatprep.subr.mxu0 0.0
        %481 = vmatpush1.msra.mxu0 %v455
        %482 = vmatprep.subr.mxu0 0.0
        %483 = vmatpush1.msra.mxu0 %v456
        %484 = vmatprep.subr.mxu0 0.0
        %485 = vmatpush1.msra.mxu0 %v457
        %486 = vmatprep.subr.mxu0 0.0
        %487 = vmatpush1.msra.mxu0 0.0
        %488 = vmatprep.subr.mxu0 0.0
        %489 = vmatpush1.msra.mxu0 0.0
        %490 = vmatprep.subr.mxu0 0.0
        %491 = vmatpush1.msra.mxu0 0.0
        %492 = vmatprep.subr.mxu0 0.0
        %493 = vmatpush1.msra.mxu0 0.0
        %494 = vmatprep.subr.mxu0 0.0
        %495 = vmatpush1.msra.mxu0 0.0
        %496 = vmatprep.subr.mxu0 0.0
        %497 = vmatpush1.msra.mxu0 0.0
        %498 = vmatprep.subr.mxu0 0.0
        %499 = vmatpush1.msra.mxu0 0.0
        %500 = vmatprep.subr.mxu0 0.0
        %501 = vmatpush1.msra.mxu0 0.0
        %502 = vmatprep.subr.mxu0 0.0
        %503 = vmatpush1.msra.mxu0 0.0
        %504 = vmatprep.subr.mxu0 0.0
        %505 = vmatpush1.msra.mxu0 0.0
        %506 = vmatprep.subr.mxu0 0.0
        %507 = vmatpush1.msra.mxu0 0.0
        %508 = vmatprep.subr.mxu0 0.0
        %509 = vmatpush1.msra.mxu0 0.0
        %510 = vmatprep.subr.mxu0 0.0
        %511 = vmatpush1.msra.mxu0 0.0
        %512 = vmatprep.subr.mxu0 0.0
        %513 = vmatpush1.msra.mxu0 0.0
        %514 = vmatprep.subr.mxu0 0.0
        %515 = vmatpush1.msra.mxu0 0.0
        %516 = vmatprep.subr.mxu0 0.0
        %517 = vmatpush1.msra.mxu0 0.0
        %518 = vmatprep.subr.mxu0 0.0
        %519 = vmatpush1.msra.mxu0 0.0
        %520 = vmatprep.subr.mxu0 0.0
        %521 = vmatpush1.msra.mxu0 0.0
        %522 = vmatprep.subr.mxu0 0.0
        %523 = vmatpush1.msra.mxu0 0.0
        %524 = vmatprep.subr.mxu0 0.0
        %525 = vmatpush1.msra.mxu0 0.0
        %526 = vmatprep.subr.mxu0 0.0
        %527 = vmatpush1.msra.mxu0 0.0
        %528 = vmatprep.subr.mxu0 0.0
        %529 = vmatpush1.msra.mxu0 0.0
        %530 = vmatprep.subr.mxu0 0.0
        %531 = vmatpush1.msra.mxu0 0.0
        %532 = vmatprep.subr.mxu0 0.0
        %533 = vmatpush1.msra.mxu0 0.0
        %534 = vmatprep.subr.mxu0 0.0
        %535 = vmatpush1.msra.mxu0 0.0
        %536 = vmatprep.subr.mxu0 0.0
        %537 = vmatpush1.msra.mxu0 0.0
        %538 = vmatprep.subr.mxu0 0.0
        %539 = vmatpush1.msra.mxu0 0.0
        %540 = vmatprep.subr.mxu0 0.0
        %541 = vmatpush1.msra.mxu0 0.0
        %542 = vmatprep.mubr.f32.mxu0 0.0
        %543 = vmatmul.mubr.f32.gmra.mrb[0].mxu0 %v467
        %v544 = vpop.f32.mrb[0].mxu0
        %v545 = vadd.f32 %v463, %v544
        %v546 = vpop.f32.mrb[0].mxu0
        %547 = vmatprep.mubr.f32.mxu0 0.0
        %548 = vmatmul.mubr.f32.gmra.mrb[0].mxu0 %v470
        %v549 = vpop.f32.mrb[0].mxu0
        %v550 = vadd.f32 %v463, %v549
        %v551 = vpop.f32.mrb[0].mxu0
        %552 = vmatprep.mubr.f32.mxu0 0.0
        %553 = vmatmul.mubr.f32.gmra.mrb[0].mxu0 %v473
        %v554 = vpop.f32.mrb[0].mxu0
        %v555 = vadd.f32 %v463, %v554
        %v556 = vpop.f32.mrb[0].mxu0
        %557 = vmatprep.mubr.f32.mxu0 0.0
        %558 = vmatmul.mubr.f32.gmra.mrb[0].mxu0 %v476
        %v559 = vpop.f32.mrb[0].mxu0
        %v560 = vadd.f32 %v463, %v559
        %v561 = vpop.f32.mrb[0].mxu0
        %562 = vdwg.mxu0
        %v563 = vld [vmem:[%s388] sm:$0xff]
        %v564 = vld [vmem:[%s388 + $0x8] sm:$0xff]
        %v565 = vld [vmem:[%s388 + $0x10] sm:$0xff]
        %v566 = vld [vmem:[%s388 + $0x18] sm:$0xff]
        %s567 = scalar_lea.vmem %s388, 64 [#allocation2]
        %v568 = vld [vmem:[%s567] sm:$0xff]
        %v569 = vld [vmem:[%s567 + $0x8] sm:$0xff]
        %v570 = vld [vmem:[%s567 + $0x10] sm:$0xff]
        %v571 = vld [vmem:[%s567 + $0x18] sm:$0xff]
        %v572 = vrot.slane %v545, 7
        %v573 = vrot.slane %v550, 7
        %v574 = vrot.slane %v555, 7
        %v575 = vrot.slane %v560, 7
        %v576 = vlaneseq
        %v577 = vshrl.u32 %v576, 7
        %vm578 = vcmp.lt.s32.totalorder %v577, 1
        %v579 = vsel %vm578, %v574, %v575
        %v580 = vsel %vm578, %v573, %v574
        %v581 = vsel %vm578, %v572, %v573
        %v582 = vsel %vm578, %v575, %v572
        %584 = vset.pattern.permute.xlu0 0
        %585 = vperm.xlu0 %584, %v563
        %v586 = vpop.permute.xlu0 %585
        %589 = vset.pattern.permute.xlu0 0
        %590 = vperm.xlu0 %589, %v564
        %v591 = vpop.permute.xlu0 %590
        %594 = vset.pattern.permute.xlu0 0
        %595 = vperm.xlu0 %594, %v565
        %v596 = vpop.permute.xlu0 %595
        %599 = vset.pattern.permute.xlu0 0
        %600 = vperm.xlu0 %599, %v566
        %v601 = vpop.permute.xlu0 %600
        %v603 = vmul.f32 %v582, %v586
        %v604 = vmul.f32 %v581, %v591
        %v605 = vmul.f32 %v580, %v596
        %v606 = vmul.f32 %v579, %v601
        %v607 = vrot.slane %v545, 1
        %v608 = vrot.slane %v550, 1
        %v609 = vrot.slane %v555, 1
        %v610 = vrot.slane %v560, 1
        %vm611 = vcmp.lt.s32.totalorder %v577, 7
        %v612 = vsel %vm611, %v609, %v610
        %v613 = vsel %vm611, %v608, %v609
        %v614 = vsel %vm611, %v607, %v608
        %v615 = vsel %vm611, %v610, %v607
        %617 = vset.pattern.permute.xlu0 0
        %618 = vperm.xlu0 %617, %v568
        %v619 = vpop.permute.xlu0 %618
        %622 = vset.pattern.permute.xlu0 0
        %623 = vperm.xlu0 %622, %v569
        %v624 = vpop.permute.xlu0 %623
        %627 = vset.pattern.permute.xlu0 0
        %628 = vperm.xlu0 %627, %v570
        %v629 = vpop.permute.xlu0 %628
        %632 = vset.pattern.permute.xlu0 0
        %633 = vperm.xlu0 %632, %v571
        %v634 = vpop.permute.xlu0 %633
        %v636 = vmul.f32 %v614, %v619
        %v637 = vmul.f32 %v613, %v624
        %v638 = vmul.f32 %v612, %v629
        %v639 = vmul.f32 %v615, %v634
        %644 = vrot.lane.b32.xlu0 %v545, 32
        %v645 = vpop.permute.xlu0 %644
        %646 = vrot.lane.b32.xlu0 %v550, 32
        %v647 = vpop.permute.xlu0 %646
        %648 = vrot.lane.b32.xlu0 %v555, 32
        %v649 = vpop.permute.xlu0 %648
        %650 = vrot.lane.b32.xlu0 %v560, 32
        %v651 = vpop.permute.xlu0 %650
        %660 = vrot.lane.b32.xlu0 %v636, 64
        %v661 = vpop.permute.xlu0 %660
        %662 = vrot.lane.b32.xlu0 %v637, 64
        %v663 = vpop.permute.xlu0 %662
        %664 = vrot.lane.b32.xlu0 %v638, 64
        %v665 = vpop.permute.xlu0 %664
        %666 = vrot.lane.b32.xlu0 %v639, 64
        %v667 = vpop.permute.xlu0 %666
        %v672 = vsel %vm465, %v603, %v645
        %v673 = vsel %vm465, %v604, %v647
        %v674 = vsel %vm465, %v605, %v649
        %v675 = vsel %vm465, %v606, %v651
        %vm676 = vcmask 523264
        %v677 = vsel %vm676, %v672, %v661
        %v678 = vsel %vm676, %v673, %v663
        %v679 = vsel %vm676, %v674, %v665
        %v680 = vsel %vm676, %v675, %v667
        %v681 = vld [vmem:[%s4] sm:$0xff]
        %v682 = vld [vmem:[%s4 + $0x8] sm:$0xff]
        %v683 = vld [vmem:[%s4 + $0x10] sm:$0xff]
        %v684 = vld [vmem:[%s4 + $0x18] sm:$0xff]
        %v685 = vld [vmem:[%s4 + $0x20] sm:$0xff]
        %v686 = vld [vmem:[%s4 + $0x28] sm:$0xff]
        %v687 = vld [vmem:[%s4 + $0x30] sm:$0xff]
        %v688 = vld [vmem:[%s4 + $0x38] sm:$0xff]
        %v689 = vld [vmem:[%s4 + $0x40] sm:$0xff]
        %v690 = vld [vmem:[%s4 + $0x48] sm:$0xff]
        %v691 = vld [vmem:[%s4 + $0x50] sm:$0xff]
        %v692 = vld [vmem:[%s4 + $0x58] sm:$0xff]
        %v693 = vld [vmem:[%s5] sm:$0x1]
        %v695 = vlaneseq
        %v696 = vshrl.u32 %v695, 7
        %v697 = vsub.s32 0, %v696
        %v698 = vrot.slane %v693, %v697
        %vm700 = vcmask 785408
        %v702 = vsel %vm700, %v677, 0
        %v705 = vsel %vm700, %v678, 0
        %v708 = vsel %vm700, %v679, 0
        %v711 = vsel %vm700, %v680, 0
        %713 = vmatprep.subr.mxu0 0.0
        %714 = vmatpush1.msra.mxu0 %v681
        %715 = vmatprep.subr.mxu0 0.0
        %716 = vmatpush1.msra.mxu0 %v682
        %717 = vmatprep.subr.mxu0 0.0
        %718 = vmatpush1.msra.mxu0 %v683
        %719 = vmatprep.subr.mxu0 0.0
        %720 = vmatpush1.msra.mxu0 %v684
        %721 = vmatprep.subr.mxu0 0.0
        %722 = vmatpush1.msra.mxu0 %v685
        %723 = vmatprep.subr.mxu0 0.0
        %724 = vmatpush1.msra.mxu0 %v686
        %725 = vmatprep.subr.mxu0 0.0
        %726 = vmatpush1.msra.mxu0 %v687
        %727 = vmatprep.subr.mxu0 0.0
        %728 = vmatpush1.msra.mxu0 %v688
        %729 = vmatprep.subr.mxu0 0.0
        %730 = vmatpush1.msra.mxu0 %v689
        %731 = vmatprep.subr.mxu0 0.0
        %732 = vmatpush1.msra.mxu0 %v690
        %733 = vmatprep.subr.mxu0 0.0
        %734 = vmatpush1.msra.mxu0 %v691
        %735 = vmatprep.subr.mxu0 0.0
        %736 = vmatpush1.msra.mxu0 %v692
        %737 = vmatprep.subr.mxu0 0.0
        %738 = vmatpush1.msra.mxu0 0.0
        %739 = vmatprep.subr.mxu0 0.0
        %740 = vmatpush1.msra.mxu0 0.0
        %741 = vmatprep.subr.mxu0 0.0
        %742 = vmatpush1.msra.mxu0 0.0
        %743 = vmatprep.subr.mxu0 0.0
        %744 = vmatpush1.msra.mxu0 0.0
        %745 = vmatprep.subr.mxu0 0.0
        %746 = vmatpush1.msra.mxu0 0.0
        %747 = vmatprep.subr.mxu0 0.0
        %748 = vmatpush1.msra.mxu0 0.0
        %749 = vmatprep.subr.mxu0 0.0
        %750 = vmatpush1.msra.mxu0 0.0
        %751 = vmatprep.subr.mxu0 0.0
        %752 = vmatpush1.msra.mxu0 0.0
        %753 = vmatprep.subr.mxu0 0.0
        %754 = vmatpush1.msra.mxu0 0.0
        %755 = vmatprep.subr.mxu0 0.0
        %756 = vmatpush1.msra.mxu0 0.0
        %757 = vmatprep.subr.mxu0 0.0
        %758 = vmatpush1.msra.mxu0 0.0
        %759 = vmatprep.subr.mxu0 0.0
        %760 = vmatpush1.msra.mxu0 0.0
        %761 = vmatprep.subr.mxu0 0.0
        %762 = vmatpush1.msra.mxu0 0.0
        %763 = vmatprep.subr.mxu0 0.0
        %764 = vmatpush1.msra.mxu0 0.0
        %765 = vmatprep.subr.mxu0 0.0
        %766 = vmatpush1.msra.mxu0 0.0
        %767 = vmatprep.subr.mxu0 0.0
        %768 = vmatpush1.msra.mxu0 0.0
        %769 = vmatprep.subr.mxu0 0.0
        %770 = vmatpush1.msra.mxu0 0.0
        %771 = vmatprep.subr.mxu0 0.0
        %772 = vmatpush1.msra.mxu0 0.0
        %773 = vmatprep.subr.mxu0 0.0
        %774 = vmatpush1.msra.mxu0 0.0
        %775 = vmatprep.subr.mxu0 0.0
        %776 = vmatpush1.msra.mxu0 0.0
        %777 = vmatprep.mubr.f32.mxu0 0.0
        %778 = vmatmul.mubr.f32.gmra.mrb[0].mxu0 %v702
        %v779 = vpop.f32.mrb[0].mxu0
        %v780 = vadd.f32 %v698, %v779
        %v781 = vpop.f32.mrb[0].mxu0
        %782 = vmatprep.mubr.f32.mxu0 0.0
        %783 = vmatmul.mubr.f32.gmra.mrb[0].mxu0 %v705
        %v784 = vpop.f32.mrb[0].mxu0
        %v785 = vadd.f32 %v698, %v784
        %v786 = vpop.f32.mrb[0].mxu0
        %787 = vmatprep.mubr.f32.mxu0 0.0
        %788 = vmatmul.mubr.f32.gmra.mrb[0].mxu0 %v708
        %v789 = vpop.f32.mrb[0].mxu0
        %v790 = vadd.f32 %v698, %v789
        %v791 = vpop.f32.mrb[0].mxu0
        %792 = vmatprep.mubr.f32.mxu0 0.0
        %793 = vmatmul.mubr.f32.gmra.mrb[0].mxu0 %v711
        %v794 = vpop.f32.mrb[0].mxu0
        %v795 = vadd.f32 %v698, %v794
        %v796 = vpop.f32.mrb[0].mxu0
        %797 = vdwg.mxu0
        %v798 = vxor.u32 %v780, 2147483648
        %v799 = vxor.u32 %v785, 2147483648
        %v800 = vxor.u32 %v790, 2147483648
        %v801 = vxor.u32 %v795, 2147483648
        %v802 = vmul.f32 %v798, 1.442695
        %v803 = vpow.pop %v802
        %v804 = vmul.f32 %v799, 1.442695
        %v805 = vpow.pop %v804
        %v806 = vmul.f32 %v800, 1.442695
        %v807 = vpow.pop %v806
        %v808 = vmul.f32 %v801, 1.442695
        %v809 = vpow.pop %v808
        %v810 = vadd.f32 %v803, 1.0
        %v811 = vadd.f32 %v805, 1.0
        %v812 = vadd.f32 %v807, 1.0
        %v813 = vadd.f32 %v809, 1.0
        %v814 = vrcp.pop %v810
        %v815 = vmul.f32 1.0, %v814
        %v816 = vrcp.pop %v811
        %v817 = vmul.f32 1.0, %v816
        %v818 = vrcp.pop %v812
        %v819 = vmul.f32 1.0, %v818
        %v820 = vrcp.pop %v813
        %v821 = vmul.f32 1.0, %v820
        %826 = vrot.lane.b32.xlu0 %v815, 96
        %v827 = vpop.permute.xlu0 %826
        %828 = vrot.lane.b32.xlu0 %v817, 96
        %v829 = vpop.permute.xlu0 %828
        %830 = vrot.lane.b32.xlu0 %v819, 96
        %v831 = vpop.permute.xlu0 %830
        %832 = vrot.lane.b32.xlu0 %v821, 96
        %v833 = vpop.permute.xlu0 %832
        %v838 = vmul.f32 %v780, %v827
        %v839 = vmul.f32 %v785, %v829
        %v840 = vmul.f32 %v790, %v831
        %v841 = vmul.f32 %v795, %v833
        %v842 = vadd.f32 %v838, %v545
        %v843 = vadd.f32 %v839, %v550
        %v844 = vadd.f32 %v840, %v555
        %v845 = vadd.f32 %v841, %v560
        %v846 = vmul.f32 %v842, 0.70710677
        %v847 = vmul.f32 %v843, 0.70710677
        %v848 = vmul.f32 %v844, 0.70710677
        %v849 = vmul.f32 %v845, 0.70710677
        %v850 = vrot.slane %v846, 7
        %v851 = vrot.slane %v847, 7
        %v852 = vrot.slane %v848, 7
        %v853 = vrot.slane %v849, 7
        %v854 = vsel %vm578, %v852, %v853
        %v855 = vsel %vm578, %v851, %v852
        %v856 = vsel %vm578, %v850, %v851
        %v857 = vsel %vm578, %v853, %v850
        %v858 = vmul.f32 %v857, %v586
        %v859 = vmul.f32 %v856, %v591
        %v860 = vmul.f32 %v855, %v596
        %v861 = vmul.f32 %v854, %v601
        %v862 = vrot.slane %v846, 1
        %v863 = vrot.slane %v847, 1
        %v864 = vrot.slane %v848, 1
        %v865 = vrot.slane %v849, 1
        %v866 = vsel %vm611, %v864, %v865
        %v867 = vsel %vm611, %v863, %v864
        %v868 = vsel %vm611, %v862, %v863
        %v869 = vsel %vm611, %v865, %v862
        %v870 = vmul.f32 %v868, %v619
        %v871 = vmul.f32 %v867, %v624
        %v872 = vmul.f32 %v866, %v629
        %v873 = vmul.f32 %v869, %v634
        %878 = vrot.lane.b32.xlu0 %v846, 32
        %v879 = vpop.permute.xlu0 %878
        %880 = vrot.lane.b32.xlu0 %v847, 32
        %v881 = vpop.permute.xlu0 %880
        %882 = vrot.lane.b32.xlu0 %v848, 32
        %v883 = vpop.permute.xlu0 %882
        %884 = vrot.lane.b32.xlu0 %v849, 32
        %v885 = vpop.permute.xlu0 %884
        %894 = vrot.lane.b32.xlu0 %v870, 64
        %v895 = vpop.permute.xlu0 %894
        %896 = vrot.lane.b32.xlu0 %v871, 64
        %v897 = vpop.permute.xlu0 %896
        %898 = vrot.lane.b32.xlu0 %v872, 64
        %v899 = vpop.permute.xlu0 %898
        %900 = vrot.lane.b32.xlu0 %v873, 64
        %v901 = vpop.permute.xlu0 %900
        %v906 = vsel %vm465, %v858, %v879
        %v907 = vsel %vm465, %v859, %v881
        %v908 = vsel %vm465, %v860, %v883
        %v909 = vsel %vm465, %v861, %v885
        %v910 = vsel %vm676, %v906, %v895
        %v911 = vsel %vm676, %v907, %v897
        %v912 = vsel %vm676, %v908, %v899
        %v913 = vsel %vm676, %v909, %v901
        %s914 = scalar_lea.vmem %s4, 96
        %v915 = vld [vmem:[%s914] sm:$0xff]
        %v916 = vld [vmem:[%s914 + $0x8] sm:$0xff]
        %v917 = vld [vmem:[%s914 + $0x10] sm:$0xff]
        %v918 = vld [vmem:[%s914 + $0x18] sm:$0xff]
        %v919 = vld [vmem:[%s914 + $0x20] sm:$0xff]
        %v920 = vld [vmem:[%s914 + $0x28] sm:$0xff]
        %v921 = vld [vmem:[%s914 + $0x30] sm:$0xff]
        %v922 = vld [vmem:[%s914 + $0x38] sm:$0xff]
        %v923 = vld [vmem:[%s914 + $0x40] sm:$0xff]
        %v924 = vld [vmem:[%s914 + $0x48] sm:$0xff]
        %v925 = vld [vmem:[%s914 + $0x50] sm:$0xff]
        %v926 = vld [vmem:[%s914 + $0x58] sm:$0xff]
        %s927 = scalar_lea.vmem %s5, 1
        %v928 = vld [vmem:[%s927] sm:$0x1]
        %v930 = vlaneseq
        %v931 = vshrl.u32 %v930, 7
        %v932 = vsub.s32 0, %v931
        %v933 = vrot.slane %v928, %v932
        %v936 = vsel %vm700, %v910, 0
        %v939 = vsel %vm700, %v911, 0
        %v942 = vsel %vm700, %v912, 0
        %v945 = vsel %vm700, %v913, 0
        %947 = vmatprep.subr.mxu0 0.0
        %948 = vmatpush1.msra.mxu0 %v915
        %949 = vmatprep.subr.mxu0 0.0
        %950 = vmatpush1.msra.mxu0 %v916
        %951 = vmatprep.subr.mxu0 0.0
        %952 = vmatpush1.msra.mxu0 %v917
        %953 = vmatprep.subr.mxu0 0.0
        %954 = vmatpush1.msra.mxu0 %v918
        %955 = vmatprep.subr.mxu0 0.0
        %956 = vmatpush1.msra.mxu0 %v919
        %957 = vmatprep.subr.mxu0 0.0
        %958 = vmatpush1.msra.mxu0 %v920
        %959 = vmatprep.subr.mxu0 0.0
        %960 = vmatpush1.msra.mxu0 %v921
        %961 = vmatprep.subr.mxu0 0.0
        %962 = vmatpush1.msra.mxu0 %v922
        %963 = vmatprep.subr.mxu0 0.0
        %964 = vmatpush1.msra.mxu0 %v923
        %965 = vmatprep.subr.mxu0 0.0
        %966 = vmatpush1.msra.mxu0 %v924
        %967 = vmatprep.subr.mxu0 0.0
        %968 = vmatpush1.msra.mxu0 %v925
        %969 = vmatprep.subr.mxu0 0.0
        %970 = vmatpush1.msra.mxu0 %v926
        %971 = vmatprep.subr.mxu0 0.0
        %972 = vmatpush1.msra.mxu0 0.0
        %973 = vmatprep.subr.mxu0 0.0
        %974 = vmatpush1.msra.mxu0 0.0
        %975 = vmatprep.subr.mxu0 0.0
        %976 = vmatpush1.msra.mxu0 0.0
        %977 = vmatprep.subr.mxu0 0.0
        %978 = vmatpush1.msra.mxu0 0.0
        %979 = vmatprep.subr.mxu0 0.0
        %980 = vmatpush1.msra.mxu0 0.0
        %981 = vmatprep.subr.mxu0 0.0
        %982 = vmatpush1.msra.mxu0 0.0
        %983 = vmatprep.subr.mxu0 0.0
        %984 = vmatpush1.msra.mxu0 0.0
        %985 = vmatprep.subr.mxu0 0.0
        %986 = vmatpush1.msra.mxu0 0.0
        %987 = vmatprep.subr.mxu0 0.0
        %988 = vmatpush1.msra.mxu0 0.0
        %989 = vmatprep.subr.mxu0 0.0
        %990 = vmatpush1.msra.mxu0 0.0
        %991 = vmatprep.subr.mxu0 0.0
        %992 = vmatpush1.msra.mxu0 0.0
        %993 = vmatprep.subr.mxu0 0.0
        %994 = vmatpush1.msra.mxu0 0.0
        %995 = vmatprep.subr.mxu0 0.0
        %996 = vmatpush1.msra.mxu0 0.0
        %997 = vmatprep.subr.mxu0 0.0
        %998 = vmatpush1.msra.mxu0 0.0
        %999 = vmatprep.subr.mxu0 0.0
        %1000 = vmatpush1.msra.mxu0 0.0
        %1001 = vmatprep.subr.mxu0 0.0
        %1002 = vmatpush1.msra.mxu0 0.0
        %1003 = vmatprep.subr.mxu0 0.0
        %1004 = vmatpush1.msra.mxu0 0.0
        %1005 = vmatprep.subr.mxu0 0.0
        %1006 = vmatpush1.msra.mxu0 0.0
        %1007 = vmatprep.subr.mxu0 0.0
        %1008 = vmatpush1.msra.mxu0 0.0
        %1009 = vmatprep.subr.mxu0 0.0
        %1010 = vmatpush1.msra.mxu0 0.0
        %1011 = vmatprep.mubr.f32.mxu0 0.0
        %1012 = vmatmul.mubr.f32.gmra.mrb[0].mxu0 %v936
        %v1013 = vpop.f32.mrb[0].mxu0
        %v1014 = vadd.f32 %v933, %v1013
        %v1015 = vpop.f32.mrb[0].mxu0
        %1016 = vmatprep.mubr.f32.mxu0 0.0
        %1017 = vmatmul.mubr.f32.gmra.mrb[0].mxu0 %v939
        %v1018 = vpop.f32.mrb[0].mxu0
        %v1019 = vadd.f32 %v933, %v1018
        %v1020 = vpop.f32.mrb[0].mxu0
        %1021 = vmatprep.mubr.f32.mxu0 0.0
        %1022 = vmatmul.mubr.f32.gmra.mrb[0].mxu0 %v942
        %v1023 = vpop.f32.mrb[0].mxu0
        %v1024 = vadd.f32 %v933, %v1023
        %v1025 = vpop.f32.mrb[0].mxu0
        %1026 = vmatprep.mubr.f32.mxu0 0.0
        %1027 = vmatmul.mubr.f32.gmra.mrb[0].mxu0 %v945
        %v1028 = vpop.f32.mrb[0].mxu0
        %v1029 = vadd.f32 %v933, %v1028
        %v1030 = vpop.f32.mrb[0].mxu0
        %1031 = vdwg.mxu0
        %v1032 = vxor.u32 %v1014, 2147483648
        %v1033 = vxor.u32 %v1019, 2147483648
        %v1034 = vxor.u32 %v1024, 2147483648
        %v1035 = vxor.u32 %v1029, 2147483648
        %v1036 = vmul.f32 %v1032, 1.442695
        %v1037 = vpow.pop %v1036
        %v1038 = vmul.f32 %v1033, 1.442695
        %v1039 = vpow.pop %v1038
        %v1040 = vmul.f32 %v1034, 1.442695
        %v1041 = vpow.pop %v1040
        %v1042 = vmul.f32 %v1035, 1.442695
        %v1043 = vpow.pop %v1042
        %v1044 = vadd.f32 %v1037, 1.0
        %v1045 = vadd.f32 %v1039, 1.0
        %v1046 = vadd.f32 %v1041, 1.0
        %v1047 = vadd.f32 %v1043, 1.0
        %v1048 = vrcp.pop %v1044
        %v1049 = vmul.f32 1.0, %v1048
        %v1050 = vrcp.pop %v1045
        %v1051 = vmul.f32 1.0, %v1050
        %v1052 = vrcp.pop %v1046
        %v1053 = vmul.f32 1.0, %v1052
        %v1054 = vrcp.pop %v1047
        %v1055 = vmul.f32 1.0, %v1054
        %1060 = vrot.lane.b32.xlu0 %v1049, 96
        %v1061 = vpop.permute.xlu0 %1060
        %1062 = vrot.lane.b32.xlu0 %v1051, 96
        %v1063 = vpop.permute.xlu0 %1062
        %1064 = vrot.lane.b32.xlu0 %v1053, 96
        %v1065 = vpop.permute.xlu0 %1064
        %1066 = vrot.lane.b32.xlu0 %v1055, 96
        %v1067 = vpop.permute.xlu0 %1066
        %v1072 = vmul.f32 %v1014, %v1061
        %v1073 = vmul.f32 %v1019, %v1063
        %v1074 = vmul.f32 %v1024, %v1065
        %v1075 = vmul.f32 %v1029, %v1067
        %v1076 = vadd.f32 %v1072, %v846
        %v1077 = vadd.f32 %v1073, %v847
        %v1078 = vadd.f32 %v1074, %v848
        %v1079 = vadd.f32 %v1075, %v849
        %v1080 = vmul.f32 %v1076, 0.70710677
        %v1081 = vmul.f32 %v1077, 0.70710677
        %v1082 = vmul.f32 %v1078, 0.70710677
        %v1083 = vmul.f32 %v1079, 0.70710677
        %v1084 = vld [vmem:[%s6] sm:$0xff]
        %v1085 = vld [vmem:[%s6 + $0x8] sm:$0xff]
        %v1086 = vld [vmem:[%s6 + $0x10] sm:$0xff]
        %v1087 = vld [vmem:[%s6 + $0x18] sm:$0xff]
        %v1088 = vld [vmem:[%s7] sm:$0x1]
        %v1090 = vlaneseq
        %v1091 = vshrl.u32 %v1090, 7
        %v1092 = vsub.s32 0, %v1091
        %v1093 = vrot.slane %v1088, %v1092
        %v1096 = vsel %vm465, %v1080, 0
        %v1099 = vsel %vm465, %v1081, 0
        %v1102 = vsel %vm465, %v1082, 0
        %v1105 = vsel %vm465, %v1083, 0
        %1107 = vmatprep.subr.mxu0 0.0
        %1108 = vmatpush1.msra.mxu0 %v1084
        %1109 = vmatprep.subr.mxu0 0.0
        %1110 = vmatpush1.msra.mxu0 %v1085
        %1111 = vmatprep.subr.mxu0 0.0
        %1112 = vmatpush1.msra.mxu0 %v1086
        %1113 = vmatprep.subr.mxu0 0.0
        %1114 = vmatpush1.msra.mxu0 %v1087
        %1115 = vmatprep.subr.mxu0 0.0
        %1116 = vmatpush1.msra.mxu0 0.0
        %1117 = vmatprep.subr.mxu0 0.0
        %1118 = vmatpush1.msra.mxu0 0.0
        %1119 = vmatprep.subr.mxu0 0.0
        %1120 = vmatpush1.msra.mxu0 0.0
        %1121 = vmatprep.subr.mxu0 0.0
        %1122 = vmatpush1.msra.mxu0 0.0
        %1123 = vmatprep.subr.mxu0 0.0
        %1124 = vmatpush1.msra.mxu0 0.0
        %1125 = vmatprep.subr.mxu0 0.0
        %1126 = vmatpush1.msra.mxu0 0.0
        %1127 = vmatprep.subr.mxu0 0.0
        %1128 = vmatpush1.msra.mxu0 0.0
        %1129 = vmatprep.subr.mxu0 0.0
        %1130 = vmatpush1.msra.mxu0 0.0
        %1131 = vmatprep.subr.mxu0 0.0
        %1132 = vmatpush1.msra.mxu0 0.0
        %1133 = vmatprep.subr.mxu0 0.0
        %1134 = vmatpush1.msra.mxu0 0.0
        %1135 = vmatprep.subr.mxu0 0.0
        %1136 = vmatpush1.msra.mxu0 0.0
        %1137 = vmatprep.subr.mxu0 0.0
        %1138 = vmatpush1.msra.mxu0 0.0
        %1139 = vmatprep.subr.mxu0 0.0
        %1140 = vmatpush1.msra.mxu0 0.0
        %1141 = vmatprep.subr.mxu0 0.0
        %1142 = vmatpush1.msra.mxu0 0.0
        %1143 = vmatprep.subr.mxu0 0.0
        %1144 = vmatpush1.msra.mxu0 0.0
        %1145 = vmatprep.subr.mxu0 0.0
        %1146 = vmatpush1.msra.mxu0 0.0
        %1147 = vmatprep.subr.mxu0 0.0
        %1148 = vmatpush1.msra.mxu0 0.0
        %1149 = vmatprep.subr.mxu0 0.0
        %1150 = vmatpush1.msra.mxu0 0.0
        %1151 = vmatprep.subr.mxu0 0.0
        %1152 = vmatpush1.msra.mxu0 0.0
        %1153 = vmatprep.subr.mxu0 0.0
        %1154 = vmatpush1.msra.mxu0 0.0
        %1155 = vmatprep.subr.mxu0 0.0
        %1156 = vmatpush1.msra.mxu0 0.0
        %1157 = vmatprep.subr.mxu0 0.0
        %1158 = vmatpush1.msra.mxu0 0.0
        %1159 = vmatprep.subr.mxu0 0.0
        %1160 = vmatpush1.msra.mxu0 0.0
        %1161 = vmatprep.subr.mxu0 0.0
        %1162 = vmatpush1.msra.mxu0 0.0
        %1163 = vmatprep.subr.mxu0 0.0
        %1164 = vmatpush1.msra.mxu0 0.0
        %1165 = vmatprep.subr.mxu0 0.0
        %1166 = vmatpush1.msra.mxu0 0.0
        %1167 = vmatprep.subr.mxu0 0.0
        %1168 = vmatpush1.msra.mxu0 0.0
        %1169 = vmatprep.subr.mxu0 0.0
        %1170 = vmatpush1.msra.mxu0 0.0
        %1171 = vmatprep.mubr.f32.mxu0 0.0
        %1172 = vmatmul.mubr.f32.gmra.mrb[0].mxu0 %v1096
        %v1173 = vpop.f32.mrb[0].mxu0
        %v1174 = vadd.f32 %v1093, %v1173
        %v1175 = vpop.f32.mrb[0].mxu0
        %1176 = vmatprep.mubr.f32.mxu0 0.0
        %1177 = vmatmul.mubr.f32.gmra.mrb[0].mxu0 %v1099
        %v1178 = vpop.f32.mrb[0].mxu0
        %v1179 = vadd.f32 %v1093, %v1178
        %v1180 = vpop.f32.mrb[0].mxu0
        %1181 = vmatprep.mubr.f32.mxu0 0.0
        %1182 = vmatmul.mubr.f32.gmra.mrb[0].mxu0 %v1102
        %v1183 = vpop.f32.mrb[0].mxu0
        %v1184 = vadd.f32 %v1093, %v1183
        %v1185 = vpop.f32.mrb[0].mxu0
        %1186 = vmatprep.mubr.f32.mxu0 0.0
        %1187 = vmatmul.mubr.f32.gmra.mrb[0].mxu0 %v1105
        %v1188 = vpop.f32.mrb[0].mxu0
        %v1189 = vadd.f32 %v1093, %v1188
        %v1190 = vpop.f32.mrb[0].mxu0
        %1191 = vdwg.mxu0
        %1192 = vst.msk [vmem:[%s442] sm:$0xff] %vm465, %v1174
        %1193 = vst.msk [vmem:[%s442 + $0x8] sm:$0xff] %vm465, %v1179
        %1194 = vst.msk [vmem:[%s442 + $0x10] sm:$0xff] %vm465, %v1184
        %1195 = vst.msk [vmem:[%s442 + $0x18] sm:$0xff] %vm465, %v1189
        %v1196 = vadd.f32 %v1174, %v450
        %v1197 = vadd.f32 %v1179, %v451
        %v1198 = vadd.f32 %v1184, %v452
        %v1199 = vadd.f32 %v1189, %v453
        %v1200 = vmul.f32 %v1196, 0.70710677
        %v1201 = vmul.f32 %v1197, 0.70710677
        %v1202 = vmul.f32 %v1198, 0.70710677
        %v1203 = vmul.f32 %v1199, 0.70710677
        %1204 = vst.msk [vmem:[%s448] sm:$0xff] %vm465, %v1200
        %1205 = vst.msk [vmem:[%s448 + $0x8] sm:$0xff] %vm465, %v1201
        %1206 = vst.msk [vmem:[%s448 + $0x10] sm:$0xff] %vm465, %v1202
        %1207 = vst.msk [vmem:[%s448 + $0x18] sm:$0xff] %vm465, %v1203
        %s1208 = smul.u32 4, %s21
        %p1209 = scmp.lt.s32.totalorder %s1208, 7
        %s1210 = scalar_select %p1209, %s1208, 7
        %s1211 = smul.addr %s1210, 8
        %s1212 = scalar_lea.vmem %s8, %s1211
        %s1213 = smul.u32 4, %s21
        %p1214 = scmp.lt.s32.totalorder %s1213, 7
        %s1215 = scalar_select %p1214, %s1213, 7
        %s1216 = smul.addr %s1215, 8
        %s1217 = scalar_lea.vmem %s9, %s1216
        // Predicated region
        $region91: #{tpu_custom_call.1} parent=85 // pred_check
          %p1218 = pneg %p217
        $region92: #{tpu_custom_call.1} parent=85 // pred_check_branch
          %1220 = sbr.rel (%p1218) target = $region94
        $region93: #{tpu_custom_call.1} parent=85 // pred_region
          %s1221 = smul.u32 4, %s21
        $region94: #{tpu_custom_call.1} parent=85 // pred_fallthru
          _
        // Predicated region
        $region95: #{tpu_custom_call.1} parent=85 // pred_check
          %p1222 = pneg %p243
        $region96: #{tpu_custom_call.1} parent=85 // pred_check_branch
          %1224 = sbr.rel (%p1222) target = $region98
        $region97: #{tpu_custom_call.1} parent=85 // pred_region
          %s1225 = smul.u32 4, %s21
        $region98: #{tpu_custom_call.1} parent=85 // pred_fallthru
          _
      $region86: #{tpu_custom_call.1} parent=5 // pred_fallthru
        _
      %p1226 = scmp.le.s32.totalorder 2, %s16
      // Predicated region
      $region99: #{tpu_custom_call.1} parent=5 // pred_check
        %p1227 = pneg %p1226
      $region100: #{tpu_custom_call.1} parent=5 // pred_check_branch
        %1229 = sbr.rel (%p1227) target = $region102
      $region101: #{tpu_custom_call.1} parent=5 // pred_region
        %s1230 = ssub.s32 %s16, 2
        // Predicated region
        $region103: #{tpu_custom_call.1} parent=101 // pred_check
          %p1231 = pneg %p223
        $region104: #{tpu_custom_call.1} parent=101 // pred_check_branch
          %1233 = sbr.rel (%p1231) target = $region106
        $region105: #{tpu_custom_call.1} parent=101 // pred_region
          %s1234 = smul.u32 4, %s22
          %p1235 = scmp.lt.s32.totalorder %s1234, 7
          %s1236 = scalar_select %p1235, %s1234, 7
          %s1237 = smul.addr %s1236, 8
          %s1238 = scalar_lea.vmem %s8, %s1237
        $region106: #{tpu_custom_call.1} parent=101 // pred_fallthru
          _
        // Predicated region
        $region107: #{tpu_custom_call.1} parent=101 // pred_check
          %p1239 = pneg %p249
        $region108: #{tpu_custom_call.1} parent=101 // pred_check_branch
          %1241 = sbr.rel (%p1239) target = $region110
        $region109: #{tpu_custom_call.1} parent=101 // pred_region
          %s1242 = smul.u32 4, %s22
          %p1243 = scmp.lt.s32.totalorder %s1242, 7
          %s1244 = scalar_select %p1243, %s1242, 7
          %s1245 = smul.addr %s1244, 8
          %s1246 = scalar_lea.vmem %s9, %s1245
        $region110: #{tpu_custom_call.1} parent=101 // pred_fallthru
          _
      $region102: #{tpu_custom_call.1} parent=5 // pred_fallthru
        _
    $region6: #{tpu_custom_call.1} parent=1 // loop_footer
      %s20 = sadd.s32 1, %s16
    $region7: #{tpu_custom_call.1} parent=1 // loop_footer_branch
      %15 = sbr.rel target = $region3
    $region8: #{tpu_custom_call.1} parent=1 // loop_exit
      _

</llo_original>
